<compile_context>
chip_gen: v7x
topology: tpu7x:2x2x1
jax: 0.10.0
libtpu: 0.0.40
codegen_flags: <defaults>
</compile_context>

<pallas_src>
import math

import numpy as np
import jax
import jax.numpy as jnp
from jax.experimental import pallas as pl
from jax.experimental.pallas import tpu as pltpu


# ------------- fused GEMM (+bias +graph-mix +BN +res +ReLU) in one call -------------

def _round_up(x, m):
    return ((x + m - 1) // m) * m


def _make_gemm_kernel(has_bias, has_mix, has_bn, has_res, relu, eps):
    def kernel(*refs):
        i = 0
        a_ref = refs[i]; i += 1
        b_ref = refs[i]; i += 1
        acc = jnp.dot(a_ref[...], b_ref[...],
                      preferred_element_type=jnp.float32)       # bf16 MXU, f32 acc
        if has_bias:
            acc = acc + refs[i][...]
            i += 1
        if has_mix:
            # Block-diagonal graph mix: z = (I_B (x) A^T) @ acc, one MXU matmul.
            acc = jnp.dot(refs[i][...], acc.astype(jnp.bfloat16),
                          preferred_element_type=jnp.float32)
            i += 1
        if has_bn:
            g_ref, be_ref = refs[i], refs[i + 1]
            i += 2
            # One-pass train-mode batch stats over all rows (M is whole per tile).
            m_rows = acc.shape[0]
            mean = jnp.sum(acc, axis=0, keepdims=True) * (1.0 / m_rows)
            var = jnp.maximum(
                jnp.sum(acc * acc, axis=0, keepdims=True) * (1.0 / m_rows)
                - mean * mean, 0.0)
            acc = (acc - mean) * jax.lax.rsqrt(var + eps) * g_ref[...] + be_ref[...]
        if has_res:
            acc = acc + refs[i][...].astype(jnp.float32)
            i += 1
        if relu:
            acc = jnp.maximum(acc, 0.0)
        o_ref = refs[i]
        o_ref[...] = acc.astype(o_ref.dtype)
    return kernel


def gemm_fused(a, b, *, bias=None, mix=None, bn=None, res=None, relu=False,
               eps=1e-5, out_dtype=jnp.float32):
    """out = [BN]( [mix @] (a @ b + bias) ) [+ res] [ReLU] in one pallas_call.

    a: (M, K), b: (K, N).  mix: optional (M, M) matrix applied on the left of the
    accumulator (used for the ST-GCN block-diagonal graph mix).  bn = (gamma,
    beta) uses batch statistics over rows, which is safe because every output
    tile contains the full M dimension (grid only tiles N)."""
    M, K = a.shape
    K2, N = b.shape
    assert K == K2
    a = a.astype(jnp.bfloat16)
    b = b.astype(jnp.bfloat16)

    # N-tile selection: block == full dim is always legal (no padding of small N);
    # 256-wide tiles match the 256-wide MXU on v6e/v7x for the wide layers.
    if N <= 256:
        tn, Np = N, N
    elif N >= 512:
        tn = 256
        Np = _round_up(N, tn)
    else:
        tn = 128
        Np = _round_up(N, tn)

    def pad_n(x2d):
        return x2d if Np == N else jnp.pad(x2d, ((0, 0), (0, Np - x2d.shape[1])))

    operands = [a, pad_n(b)]
    in_specs = [pl.BlockSpec((M, K), lambda j: (0, 0)),
                pl.BlockSpec((K, tn), lambda j: (0, j))]
    if bias is not None:
        operands.append(pad_n(bias.astype(jnp.float32).reshape(1, N)))
        in_specs.append(pl.BlockSpec((1, tn), lambda j: (0, j)))
    if mix is not None:
        assert mix.shape == (M, M)
        operands.append(mix.astype(jnp.bfloat16))
        in_specs.append(pl.BlockSpec((M, M), lambda j: (0, 0)))
    if bn is not None:
        g, be = bn
        operands.append(pad_n(g.astype(jnp.float32).reshape(1, N)))
        in_specs.append(pl.BlockSpec((1, tn), lambda j: (0, j)))
        operands.append(pad_n(be.astype(jnp.float32).reshape(1, N)))
        in_specs.append(pl.BlockSpec((1, tn), lambda j: (0, j)))
    if res is not None:
        operands.append(pad_n(res))
        in_specs.append(pl.BlockSpec((M, tn), lambda j: (0, j)))

    kern = _make_gemm_kernel(bias is not None, mix is not None, bn is not None,
                             res is not None, relu, eps)
    out = pl.pallas_call(
        kern,
        out_shape=jax.ShapeDtypeStruct((M, Np), out_dtype),
        grid=(Np // tn,),
        in_specs=in_specs,
        out_specs=pl.BlockSpec((M, tn), lambda j: (0, j)),
        compiler_params=pltpu.CompilerParams(
            dimension_semantics=("parallel",),
            # every tile in this configuration is <3 MiB; re-derive for real
            # image sizes (v7x physical VMEM is 64 MiB, half of v5e/v6e).
            vmem_limit_bytes=32 * 1024 * 1024),
    )(*operands)
    return out if Np == N else out[:, :N]


# --------------------------- small standalone kernels ---------------------------

def _max_mid_kernel(x_ref, o_ref):
    o_ref[...] = jnp.max(x_ref[...].astype(jnp.float32), axis=1).astype(o_ref.dtype)


def max_pool_mid(x, out_dtype=jnp.bfloat16):
    # Natural (B, taps, C) layout: reduce the middle axis, keep C lane-dense.
    B, L, C = x.shape
    return pl.pallas_call(_max_mid_kernel,
                          out_shape=jax.ShapeDtypeStruct((B, C), out_dtype))(x)


# ----------------------------- conv helpers (glue) -----------------------------

def _im2col_2d(x, kh, kw, stride, pad, pad_value=0.0):
    N, H, W, C = x.shape
    xp = jnp.pad(x, ((0, 0), (pad, pad), (pad, pad), (0, 0)),
                 constant_values=pad_value)
    OH = (H + 2 * pad - kh) // stride + 1
    OW = (W + 2 * pad - kw) // stride + 1
    cols = []
    for i in range(kh):
        for j in range(kw):
            cols.append(xp[:, i:i + stride * OH:stride,
                           j:j + stride * OW:stride, :])
    patches = jnp.stack(cols, axis=3)   # (N, OH, OW, kh*kw, C)
    return patches, OH, OW


def conv2d_fused(x, w_mat, c_out, kh, kw, stride, pad, *, bias=None, bn=None,
                 res=None, relu=False, out_dtype=jnp.bfloat16):
    """NHWC conv via im2col + fused Pallas GEMM.  w_mat: (kh*kw*Cin, Cout)."""
    N, H, W, C = x.shape
    patches, OH, OW = _im2col_2d(x, kh, kw, stride, pad)
    cols = patches.reshape(N * OH * OW, kh * kw * C)
    y = gemm_fused(cols, w_mat, bias=bias, bn=bn, res=res, relu=relu,
                   out_dtype=out_dtype)
    return y.reshape(N, OH, OW, c_out)


def maxpool_3x3_s2(x):
    N, H, W, C = x.shape
    patches, OH, OW = _im2col_2d(x, 3, 3, 2, 1, pad_value=-1e30)
    stacked = patches.reshape(N * OH * OW, 9, C)   # tap axis in middle, C lane-dense
    y = max_pool_mid(stacked, out_dtype=x.dtype)
    return y.reshape(N, OH, OW, C)


# ----------------------------- parameter init -----------------------------

class KeyGen:
    def __init__(self, seed):
        self._key = jax.random.PRNGKey(seed)

    def __call__(self):
        self._key, sub = jax.random.split(self._key)
        return sub


def _winit(kg, shape, fan_in):
    return jax.random.normal(kg(), shape, jnp.float32) * (1.0 / math.sqrt(fan_in))


def init_resnet_params(kg):
    # torchvision resnet18 with conv1: 1->64 (7x7, s2, p3) and fc: 512->256
    p = {}
    p['conv1_w'] = _winit(kg, (7 * 7 * 1, 64), 7 * 7 * 1)
    p['bn1_g'] = jnp.ones((64,), jnp.float32)
    p['bn1_b'] = jnp.zeros((64,), jnp.float32)
    layers = []
    c_in = 64
    for li, c_out in enumerate([64, 128, 256, 512]):
        blocks = []
        for bi in range(2):
            stride = 2 if (li > 0 and bi == 0) else 1
            blk = {
                'stride': stride, 'c_out': c_out,
                'conv1_w': _winit(kg, (3 * 3 * c_in, c_out), 3 * 3 * c_in),
                'bn1_g': jnp.ones((c_out,), jnp.float32),
                'bn1_b': jnp.zeros((c_out,), jnp.float32),
                'conv2_w': _winit(kg, (3 * 3 * c_out, c_out), 3 * 3 * c_out),
                'bn2_g': jnp.ones((c_out,), jnp.float32),
                'bn2_b': jnp.zeros((c_out,), jnp.float32),
            }
            if stride != 1 or c_in != c_out:
                blk['down_w'] = _winit(kg, (1 * 1 * c_in, c_out), c_in)
                blk['down_g'] = jnp.ones((c_out,), jnp.float32)
                blk['down_b'] = jnp.zeros((c_out,), jnp.float32)
            blocks.append(blk)
            c_in = c_out
        layers.append(blocks)
    p['layers'] = layers
    p['fc_w'] = _winit(kg, (512, 256), 512)          # Linear(512, 256)
    p['fc_b'] = jnp.zeros((256,), jnp.float32)
    return p


def build_graph_A(V=18):
    # ST-GCN 'openpose' layout, 'uniform' partition strategy (K = 1).
    edges = [(4, 3), (3, 2), (7, 6), (6, 5), (13, 12), (12, 11), (10, 9),
             (9, 8), (11, 5), (8, 2), (5, 1), (2, 1), (0, 1), (15, 0),
             (14, 0), (17, 15), (16, 14)]
    A = np.zeros((V, V), np.float32)
    for i, j in edges:
        A[i, j] = 1.0
        A[j, i] = 1.0
    A += np.eye(V, dtype=np.float32)
    d = A.sum(axis=0)
    A = A / np.where(d > 0, d, 1.0)[None, :]          # A @ D^-1
    return jnp.asarray(A)


STGCN_CFG = [
    (2, 64, 1, False),
    (64, 64, 1, True), (64, 64, 1, True), (64, 64, 1, True),
    (64, 128, 2, True), (128, 128, 1, True), (128, 128, 1, True),
    (128, 256, 2, True), (256, 256, 1, True), (256, 256, 1, True),
]


def init_stgcn_params(kg, in_channels=2, V=18):
    A = build_graph_A(V)
    p = {'A_T': jnp.transpose(A),       # a_t[w, v] = A[v, w]
         'data_bn_g': jnp.ones((in_channels * V,), jnp.float32),
         'data_bn_b': jnp.zeros((in_channels * V,), jnp.float32)}
    blocks = []
    for (c_in, c_out, stride, residual) in STGCN_CFG:
        blk = {
            'c_in': c_in, 'c_out': c_out, 'stride': stride,
            'residual': residual,
            'gcn_w': _winit(kg, (c_in, c_out), c_in),            # 1x1 conv, K=1
            'gcn_b': jnp.zeros((c_out,), jnp.float32),
            'tbn1_g': jnp.ones((c_out,), jnp.float32),
            'tbn1_b': jnp.zeros((c_out,), jnp.float32),
            'tcn_w': _winit(kg, (9 * c_out, c_out), 9 * c_out),  # (9,1) temporal conv
            'tcn_b': jnp.zeros((c_out,), jnp.float32),
            'tbn2_g': jnp.ones((c_out,), jnp.float32),
            'tbn2_b': jnp.zeros((c_out,), jnp.float32),
        }
        if residual and (c_in != c_out or stride != 1):
            blk['res_w'] = _winit(kg, (c_in, c_out), c_in)
            blk['res_bias'] = jnp.zeros((c_out,), jnp.float32)
            blk['res_g'] = jnp.ones((c_out,), jnp.float32)
            blk['res_b'] = jnp.zeros((c_out,), jnp.float32)
        blocks.append(blk)
    p['blocks'] = blocks
    return p


def init_params(seed=42, num_classes=6):
    kg = KeyGen(seed)
    return {
        'resnet': init_resnet_params(kg),
        'stgcn': init_stgcn_params(kg),
        'fc_w': _winit(kg, (512, num_classes), 512),   # Linear(512, num_classes)
        'fc_b': jnp.zeros((num_classes,), jnp.float32),
    }


# ----------------------------- forward passes -----------------------------

def basic_block(x, blk):
    N, H, W, c_in = x.shape
    s = blk['stride']
    c_out = blk['c_out']
    # conv1 + BN + ReLU fused (1 call)
    y = conv2d_fused(x, blk['conv1_w'], c_out, 3, 3, s, 1,
                     bn=(blk['bn1_g'], blk['bn1_b']), relu=True)
    _, OH, OW, _ = y.shape
    # residual branch
    if 'down_w' in blk:
        r = conv2d_fused(x, blk['down_w'], c_out, 1, 1, s, 0,
                         bn=(blk['down_g'], blk['down_b']), relu=False)
        r = r.reshape(N * OH * OW, c_out)
    else:
        r = x.reshape(N * H * W, c_in)
    # conv2 + BN + residual add + ReLU fused (1 call)
    out = conv2d_fused(y, blk['conv2_w'], c_out, 3, 3, 1, 1,
                       bn=(blk['bn2_g'], blk['bn2_b']), res=r, relu=True)
    return out


def resnet_forward(img_nchw, p):
    # NCHW -> NHWC
    x = jnp.transpose(img_nchw, (0, 2, 3, 1)).astype(jnp.bfloat16)
    x = conv2d_fused(x, p['conv1_w'], 64, 7, 7, 2, 3,
                     bn=(p['bn1_g'], p['bn1_b']), relu=True)
    x = maxpool_3x3_s2(x)
    for blocks in p['layers']:
        for blk in blocks:
            x = basic_block(x, blk)
    # AdaptiveAvgPool2d(1): tiny reduction, done as XLA glue (launch-bound here),
    # kept bf16 into the fc GEMM.
    pooled = jnp.mean(x.astype(jnp.float32), axis=(1, 2)).astype(jnp.bfloat16)
    return gemm_fused(pooled, p['fc_w'], bias=p['fc_b'],
                      out_dtype=jnp.float32)                        # (N, 256)


def stgcn_block(x, a_t, blk):
    NM, T, V, c_in = x.shape
    s = blk['stride']
    c_out = blk['c_out']
    B = NM * T
    # residual branch (stored bf16 -- added in f32 inside the tcn epilogue)
    if not blk['residual']:
        res = None
    elif 'res_w' in blk:
        xr = x[:, ::s, :, :]
        Tr = xr.shape[1]
        res = gemm_fused(xr.reshape(NM * Tr * V, c_in), blk['res_w'],
                         bias=blk['res_bias'], bn=(blk['res_g'], blk['res_b']),
                         relu=False, out_dtype=jnp.bfloat16)
    else:
        res = x.reshape(NM * T * V, c_in)
    # gcn 1x1 GEMM + graph mix + BN + ReLU fused into ONE pallas_call.
    # The mix is z = (I_B (x) A^T) @ (x @ W + b): rows are contiguous in V, so
    # the block-diagonal Kronecker matrix turns the NM*T batched 18x18 matmuls
    # into a single dense MXU matmul inside the GEMM epilogue.
    a_mix = jnp.kron(jnp.eye(B, dtype=jnp.float32), a_t)   # (B*V, B*V)
    y = gemm_fused(x.reshape(NM * T * V, c_in), blk['gcn_w'], bias=blk['gcn_b'],
                   mix=a_mix, bn=(blk['tbn1_g'], blk['tbn1_b']), relu=True,
                   out_dtype=jnp.bfloat16)
    y = y.reshape(NM, T, V, c_out)
    # tcn: (9,1) temporal conv (stride s, pad 4) + BN + residual + ReLU fused
    yp = jnp.pad(y, ((0, 0), (4, 4), (0, 0), (0, 0)))
    T_out = (T + 8 - 9) // s + 1
    cols = jnp.stack([yp[:, k:k + s * T_out:s, :, :] for k in range(9)],
                     axis=3).reshape(NM * T_out * V, 9 * c_out)
    out = gemm_fused(cols, blk['tcn_w'], bias=blk['tcn_b'],
                     bn=(blk['tbn2_g'], blk['tbn2_b']), res=res, relu=True,
                     out_dtype=jnp.bfloat16)
    return out.reshape(NM, T_out, V, c_out)


def stgcn_forward(landmark, p):
    # landmark: (N, C, T, V, M); working layout (N*M, T, V, C), channels last
    N, C, T, V, M = landmark.shape
    assert M == 1, "data_bn channel count (C*V) assumes a single person (M=1)"
    x = jnp.transpose(landmark, (0, 2, 4, 3, 1)).astype(jnp.float32)  # (N,T,M,V,C)
    x = x.reshape(N * T, M * V * C)
    # data_bn on a (N*T, 36) array: plain XLA (a pallas_call here costs more in
    # dispatch than the compute it does).
    mean = jnp.mean(x, axis=0, keepdims=True)
    var = jnp.mean(jnp.square(x - mean), axis=0, keepdims=True)
    x = ((x - mean) * jax.lax.rsqrt(var + 1e-5) * p['data_bn_g'][None, :]
         + p['data_bn_b'][None, :])
    x = x.reshape(N, T, M, V, C)
    x = jnp.transpose(x, (0, 2, 1, 3, 4)).reshape(N * M, T, V, C)
    x = x.astype(jnp.bfloat16)
    for blk in p['blocks']:
        x = stgcn_block(x, p['A_T'], blk)
    NM, Tf, Vf, Cf = x.shape
    # global average pool over (T, V): tiny reduction, XLA glue.
    pooled = jnp.mean(x.astype(jnp.float32), axis=(1, 2))          # (NM, 256)
    return pooled.reshape(N, M, Cf).mean(axis=1)                   # (N, 256)


def rensnet_and_stgcn_forward(img, landmark, params):
    feat_img = resnet_forward(img, params['resnet'])                # (N, 256)
    feat_lm = stgcn_forward(landmark, params['stgcn'])              # (N, 256)
    x = jnp.concatenate([feat_img.astype(jnp.float32),
                         feat_lm.astype(jnp.float32)], axis=1)      # (N, 512)
    return gemm_fused(x, params['fc_w'], bias=params['fc_b'],
                      out_dtype=jnp.float32)                        # (N, num_classes)


# ----------------------------- main -----------------------------

if __name__ == "__main__":
    num_classes = 6
    N = 2
    k1, k2 = jax.random.split(jax.random.PRNGKey(0))
    img = jax.random.normal(k1, (N, 1, 32, 32), jnp.float32)         # NCHW, 1-channel
    landmark = jax.random.normal(k2, (N, 2, 8, 18, 1), jnp.float32)  # (N,C,T,V,M)
    params = init_params(seed=42, num_classes=num_classes)
    out = rensnet_and_stgcn_forward(img, landmark, params)
    out = jax.block_until_ready(out)
    assert out.shape == (N, num_classes), out.shape
    assert bool(jnp.all(jnp.isfinite(out)))
    print("KERNEL_OK")
</pallas_src>

<mosaic_0001>
module attributes {stable_mosaic.version = 11 : i64} {
  func.func @kernel(%arg0: i32, %arg1: memref<512x49xbf16, #tpu.memory_space<vmem>>, %arg2: memref<49x64xbf16, #tpu.memory_space<vmem>>, %arg3: memref<1x64xf32, #tpu.memory_space<vmem>>, %arg4: memref<1x64xf32, #tpu.memory_space<vmem>>, %arg5: memref<512x64xbf16, #tpu.memory_space<vmem>>) attributes {dimension_semantics = [#tpu.dimension_semantics<parallel>], iteration_bounds = array<i64: 1>, scalar_prefetch = 0 : i64, scratch_operands = 0 : i64, tpu.core_type = #tpu.core_type<tc>, window_params = [{pipeline_mode = #tpu.pipeline_mode<synchronous>, transform_indices = @transform_0, window_bounds = array<i64: 512, 49>}, {transform_indices = @transform_1, window_bounds = array<i64: 49, 64>}, {transform_indices = @transform_2, window_bounds = array<i64: 1, 64>}, {transform_indices = @transform_3, window_bounds = array<i64: 1, 64>}, {transform_indices = @transform_4, window_bounds = array<i64: 512, 64>}]} {
    %c0 = arith.constant 0 : index
    %c0_0 = arith.constant 0 : index
    %0 = vector.load %arg1[%c0, %c0_0] : memref<512x49xbf16, #tpu.memory_space<vmem>>, vector<512x49xbf16>
    %c0_1 = arith.constant 0 : index
    %c0_2 = arith.constant 0 : index
    %1 = vector.load %arg2[%c0_1, %c0_2] : memref<49x64xbf16, #tpu.memory_space<vmem>>, vector<49x64xbf16>
    %cst = arith.constant dense<0.000000e+00> : vector<512x64xf32>
    %2 = tpu.matmul %0, %1, %cst {dimension_numbers = #tpu.dot_dimension_numbers<[1], [0], [0], [1], [0, 0, 1, 1], [], []>} : vector<512x49xbf16>, vector<49x64xbf16>, vector<512x64xf32> -> vector<512x64xf32>
    %cst_3 = arith.constant dense<0.000000e+00> : vector<64xf32>
    %3 = vector.multi_reduction <add>, %2, %cst_3 [0] : vector<512x64xf32> to vector<64xf32>
    %4 = vector.shape_cast %3 : vector<64xf32> to vector<1x64xf32>
    %cst_4 = arith.constant 0.001953125 : f32
    %5 = vector.broadcast %cst_4 : f32 to vector<1x64xf32>
    %6 = arith.mulf %4, %5 : vector<1x64xf32>
    %7 = arith.mulf %2, %2 : vector<512x64xf32>
    %cst_5 = arith.constant dense<0.000000e+00> : vector<64xf32>
    %8 = vector.multi_reduction <add>, %7, %cst_5 [0] : vector<512x64xf32> to vector<64xf32>
    %9 = vector.shape_cast %8 : vector<64xf32> to vector<1x64xf32>
    %cst_6 = arith.constant 0.001953125 : f32
    %10 = vector.broadcast %cst_6 : f32 to vector<1x64xf32>
    %11 = arith.mulf %9, %10 : vector<1x64xf32>
    %12 = arith.mulf %6, %6 : vector<1x64xf32>
    %13 = arith.subf %11, %12 : vector<1x64xf32>
    %cst_7 = arith.constant 0.000000e+00 : f32
    %14 = vector.broadcast %cst_7 : f32 to vector<1x64xf32>
    %15 = arith.maximumf %13, %14 : vector<1x64xf32>
    %16 = vector.broadcast %6 : vector<1x64xf32> to vector<512x64xf32>
    %17 = arith.subf %2, %16 : vector<512x64xf32>
    %cst_8 = arith.constant 9.99999974E-6 : f32
    %18 = vector.broadcast %cst_8 : f32 to vector<1x64xf32>
    %19 = arith.addf %15, %18 : vector<1x64xf32>
    %20 = math.rsqrt %19 : vector<1x64xf32>
    %21 = vector.broadcast %20 : vector<1x64xf32> to vector<512x64xf32>
    %22 = arith.mulf %17, %21 : vector<512x64xf32>
    %c0_9 = arith.constant 0 : index
    %c0_10 = arith.constant 0 : index
    %23 = vector.load %arg3[%c0_9, %c0_10] : memref<1x64xf32, #tpu.memory_space<vmem>>, vector<1x64xf32>
    %24 = vector.broadcast %23 : vector<1x64xf32> to vector<512x64xf32>
    %25 = arith.mulf %22, %24 : vector<512x64xf32>
    %c0_11 = arith.constant 0 : index
    %c0_12 = arith.constant 0 : index
    %26 = vector.load %arg4[%c0_11, %c0_12] : memref<1x64xf32, #tpu.memory_space<vmem>>, vector<1x64xf32>
    %27 = vector.broadcast %26 : vector<1x64xf32> to vector<512x64xf32>
    %28 = arith.addf %25, %27 : vector<512x64xf32>
    %cst_13 = arith.constant 0.000000e+00 : f32
    %29 = vector.broadcast %cst_13 : f32 to vector<512x64xf32>
    %30 = arith.maximumf %28, %29 : vector<512x64xf32>
    %31 = arith.truncf %30 : vector<512x64xf32> to vector<512x64xbf16>
    %c0_14 = arith.constant 0 : index
    %c0_15 = arith.constant 0 : index
    %32 = vector.load %arg5[%c0_14, %c0_15] : memref<512x64xbf16, #tpu.memory_space<vmem>>, vector<512x64xbf16>
    tpu.vector_store %arg5[%c0_14, %c0_15], %31 {strides = array<i32>} : memref<512x64xbf16, #tpu.memory_space<vmem>>, vector<512x64xbf16>,
    return
  }
  func.func @transform_0(%arg0: i32) -> (i32, i32) {
    %c0_i32 = arith.constant 0 : i32
    %c0_i32_0 = arith.constant 0 : i32
    %c0_i32_1 = arith.constant 0 : i32
    return %c0_i32, %c0_i32_0 : i32, i32
  }
  func.func @transform_1(%arg0: i32) -> (i32, i32) {
    %c0_i32 = arith.constant 0 : i32
    %c0_i32_0 = arith.constant 0 : i32
    return %c0_i32, %arg0 : i32, i32
  }
  func.func @transform_2(%arg0: i32) -> (i32, i32) {
    %c0_i32 = arith.constant 0 : i32
    %c0_i32_0 = arith.constant 0 : i32
    return %c0_i32, %arg0 : i32, i32
  }
  func.func @transform_3(%arg0: i32) -> (i32, i32) {
    %c0_i32 = arith.constant 0 : i32
    %c0_i32_0 = arith.constant 0 : i32
    return %c0_i32, %arg0 : i32, i32
  }
  func.func @transform_4(%arg0: i32) -> (i32, i32) {
    %c0_i32 = arith.constant 0 : i32
    %c0_i32_0 = arith.constant 0 : i32
    return %c0_i32, %arg0 : i32, i32
  }
}

</mosaic_0001>

<llo_original>
// kernel: tpu_custom_call.1
$region0: #{tpu_custom_call.1}
  #allocation0 [shape = 'u32[]', space=smem, size = 0x4, offset = 0x4, fixed_abs, tag = 'smem constant byte address 0x4 - core index']
  #allocation1 [shape = 'u32[144,128]{1,0:T(1,128)}', space=vmem, size = 0x12000, scoped, tag = 'internal scratch']
  %s0 = inlined_call_operand.vmem [shape: bf16[512,49], index: 0, kind: input, shape index: {}]
  %s1 = inlined_call_operand.vmem [shape: bf16[49,64], index: 1, kind: input, shape index: {}]
  %s2 = inlined_call_operand.vmem [shape: f32[1,64], index: 2, kind: input, shape index: {}]
  %s3 = inlined_call_operand.vmem [shape: f32[1,64], index: 3, kind: input, shape index: {}]
  %s4 = inlined_call_operand.vmem [shape: bf16[512,64], index: 4, kind: output, shape index: {}]
  %s5 = sld [smem:[#allocation0]]
  $region26: #{tpu_custom_call.1} parent=0
    _
  %s7 = ssub.s32 1, %s5
  %s8 = scalar_select 0, %s7, %s5
  // Predicated region
  $region2: #{tpu_custom_call.1} parent=0 // pred_check
    _
  $region3: #{tpu_custom_call.1} parent=0 // pred_check_branch
    %10 = sbr.rel (0) target = $region5
  $region4: #{tpu_custom_call.1} parent=0 // pred_region
    _
  $region5: #{tpu_custom_call.1} parent=0 // pred_fallthru
    _
  // Predicated region
  $region6: #{tpu_custom_call.1} parent=0 // pred_check
    _
  $region7: #{tpu_custom_call.1} parent=0 // pred_check_branch
    %12 = sbr.rel (0) target = $region9
  $region8: #{tpu_custom_call.1} parent=0 // pred_region
    _
  $region9: #{tpu_custom_call.1} parent=0 // pred_fallthru
    _
  // Predicated region
  $region10: #{tpu_custom_call.1} parent=0 // pred_check
    _
  $region11: #{tpu_custom_call.1} parent=0 // pred_check_branch
    %14 = sbr.rel (0) target = $region13
  $region12: #{tpu_custom_call.1} parent=0 // pred_region
    _
  $region13: #{tpu_custom_call.1} parent=0 // pred_fallthru
    _
  // Predicated region
  $region14: #{tpu_custom_call.1} parent=0 // pred_check
    _
  $region15: #{tpu_custom_call.1} parent=0 // pred_check_branch
    %16 = sbr.rel (0) target = $region17
  $region16: #{tpu_custom_call.1} parent=0 // pred_region
    _
  $region17: #{tpu_custom_call.1} parent=0 // pred_fallthru
    _
  %v18 = vld [vmem:[%s0] sm:$0xf]
  %v19 = vld [vmem:[%s0 + $0x4] sm:$0xf]
  %v20 = vld [vmem:[%s0 + $0x8] sm:$0xf]
  %v21 = vld [vmem:[%s0 + $0xc] sm:$0xf]
  %v22 = vld [vmem:[%s0 + $0x10] sm:$0xf]
  %v23 = vld [vmem:[%s0 + $0x14] sm:$0xf]
  %v24 = vld [vmem:[%s0 + $0x18] sm:$0xf]
  %v25 = vld [vmem:[%s0 + $0x1c] sm:$0xf]
  %v26 = vld [vmem:[%s0 + $0x20] sm:$0xf]
  %v27 = vld [vmem:[%s0 + $0x24] sm:$0xf]
  %v28 = vld [vmem:[%s0 + $0x28] sm:$0xf]
  %v29 = vld [vmem:[%s0 + $0x2c] sm:$0xf]
  %v30 = vld [vmem:[%s0 + $0x30] sm:$0xf]
  %v31 = vld [vmem:[%s0 + $0x34] sm:$0xf]
  %v32 = vld [vmem:[%s0 + $0x38] sm:$0xf]
  %v33 = vld [vmem:[%s0 + $0x3c] sm:$0xf]
  %v34 = vld [vmem:[%s0 + $0x40] sm:$0xf]
  %v35 = vld [vmem:[%s0 + $0x44] sm:$0xf]
  %v36 = vld [vmem:[%s0 + $0x48] sm:$0xf]
  %v37 = vld [vmem:[%s0 + $0x4c] sm:$0xf]
  %v38 = vld [vmem:[%s0 + $0x50] sm:$0xf]
  %v39 = vld [vmem:[%s0 + $0x54] sm:$0xf]
  %v40 = vld [vmem:[%s0 + $0x58] sm:$0xf]
  %v41 = vld [vmem:[%s0 + $0x5c] sm:$0xf]
  %v42 = vld [vmem:[%s0 + $0x60] sm:$0xf]
  %v43 = vld [vmem:[%s0 + $0x64] sm:$0xf]
  %v44 = vld [vmem:[%s0 + $0x68] sm:$0xf]
  %v45 = vld [vmem:[%s0 + $0x6c] sm:$0xf]
  %v46 = vld [vmem:[%s0 + $0x70] sm:$0xf]
  %v47 = vld [vmem:[%s0 + $0x74] sm:$0xf]
  %v48 = vld [vmem:[%s0 + $0x78] sm:$0xf]
  %v49 = vld [vmem:[%s0 + $0x7c] sm:$0xf]
  %v50 = vld [vmem:[%s0 + $0x80] sm:$0xf]
  %v51 = vld [vmem:[%s0 + $0x84] sm:$0xf]
  %v52 = vld [vmem:[%s0 + $0x88] sm:$0xf]
  %v53 = vld [vmem:[%s0 + $0x8c] sm:$0xf]
  %v54 = vld [vmem:[%s0 + $0x90] sm:$0xf]
  %v55 = vld [vmem:[%s0 + $0x94] sm:$0xf]
  %v56 = vld [vmem:[%s0 + $0x98] sm:$0xf]
  %v57 = vld [vmem:[%s0 + $0x9c] sm:$0xf]
  %v58 = vld [vmem:[%s0 + $0xa0] sm:$0xf]
  %v59 = vld [vmem:[%s0 + $0xa4] sm:$0xf]
  %v60 = vld [vmem:[%s0 + $0xa8] sm:$0xf]
  %v61 = vld [vmem:[%s0 + $0xac] sm:$0xf]
  %v62 = vld [vmem:[%s0 + $0xb0] sm:$0xf]
  %v63 = vld [vmem:[%s0 + $0xb4] sm:$0xf]
  %v64 = vld [vmem:[%s0 + $0xb8] sm:$0xf]
  %v65 = vld [vmem:[%s0 + $0xbc] sm:$0xf]
  %v66 = vld [vmem:[%s0 + $0xc0] sm:$0xf]
  %v67 = vld [vmem:[%s0 + $0xc4] sm:$0xf]
  %v68 = vld [vmem:[%s0 + $0xc8] sm:$0xf]
  %v69 = vld [vmem:[%s0 + $0xcc] sm:$0xf]
  %v70 = vld [vmem:[%s0 + $0xd0] sm:$0xf]
  %v71 = vld [vmem:[%s0 + $0xd4] sm:$0xf]
  %v72 = vld [vmem:[%s0 + $0xd8] sm:$0xf]
  %v73 = vld [vmem:[%s0 + $0xdc] sm:$0xf]
  %v74 = vld [vmem:[%s0 + $0xe0] sm:$0xf]
  %v75 = vld [vmem:[%s0 + $0xe4] sm:$0xf]
  %v76 = vld [vmem:[%s0 + $0xe8] sm:$0xf]
  %v77 = vld [vmem:[%s0 + $0xec] sm:$0xf]
  %v78 = vld [vmem:[%s0 + $0xf0] sm:$0xf]
  %v79 = vld [vmem:[%s0 + $0xf4] sm:$0xf]
  %v80 = vld [vmem:[%s0 + $0xf8] sm:$0xf]
  %v81 = vld [vmem:[%s0 + $0xfc] sm:$0xf]
  %v82 = vld [vmem:[%s1] sm:$0xf]
  %v83 = vld [vmem:[%s1 + $0x4] sm:$0xf]
  %v84 = vld [vmem:[%s1 + $0x8] sm:$0xf]
  %v85 = vld [vmem:[%s1 + $0xc] sm:$0xf]
  %v86 = vld [vmem:[%s1 + $0x10] sm:$0xf]
  %v87 = vld [vmem:[%s1 + $0x14] sm:$0xf]
  %v88 = vld [vmem:[%s1 + $0x18] sm:$0x1]
  %v153 = vunpack.c.l.b16 %v18
  %v154 = vunpack.c.l.b16 %v19
  %v155 = vunpack.c.l.b16 %v20
  %v156 = vunpack.c.l.b16 %v21
  %v157 = vunpack.c.l.b16 %v22
  %v158 = vunpack.c.l.b16 %v23
  %v159 = vunpack.c.l.b16 %v24
  %v160 = vunpack.c.l.b16 %v25
  %v161 = vunpack.c.l.b16 %v26
  %v162 = vunpack.c.l.b16 %v27
  %v163 = vunpack.c.l.b16 %v28
  %v164 = vunpack.c.l.b16 %v29
  %v165 = vunpack.c.l.b16 %v30
  %v166 = vunpack.c.l.b16 %v31
  %v167 = vunpack.c.l.b16 %v32
  %v168 = vunpack.c.l.b16 %v33
  %v169 = vunpack.c.l.b16 %v34
  %v170 = vunpack.c.l.b16 %v35
  %v171 = vunpack.c.l.b16 %v36
  %v172 = vunpack.c.l.b16 %v37
  %v173 = vunpack.c.l.b16 %v38
  %v174 = vunpack.c.l.b16 %v39
  %v175 = vunpack.c.l.b16 %v40
  %v176 = vunpack.c.l.b16 %v41
  %v177 = vunpack.c.l.b16 %v42
  %v178 = vunpack.c.l.b16 %v43
  %v179 = vunpack.c.l.b16 %v44
  %v180 = vunpack.c.l.b16 %v45
  %v181 = vunpack.c.l.b16 %v46
  %v182 = vunpack.c.l.b16 %v47
  %v183 = vunpack.c.l.b16 %v48
  %v184 = vunpack.c.l.b16 %v49
  %v185 = vunpack.c.l.b16 %v50
  %v186 = vunpack.c.l.b16 %v51
  %v187 = vunpack.c.l.b16 %v52
  %v188 = vunpack.c.l.b16 %v53
  %v189 = vunpack.c.l.b16 %v54
  %v190 = vunpack.c.l.b16 %v55
  %v191 = vunpack.c.l.b16 %v56
  %v192 = vunpack.c.l.b16 %v57
  %v193 = vunpack.c.l.b16 %v58
  %v194 = vunpack.c.l.b16 %v59
  %v195 = vunpack.c.l.b16 %v60
  %v196 = vunpack.c.l.b16 %v61
  %v197 = vunpack.c.l.b16 %v62
  %v198 = vunpack.c.l.b16 %v63
  %v199 = vunpack.c.l.b16 %v64
  %v200 = vunpack.c.l.b16 %v65
  %v201 = vunpack.c.l.b16 %v66
  %v202 = vunpack.c.l.b16 %v67
  %v203 = vunpack.c.l.b16 %v68
  %v204 = vunpack.c.l.b16 %v69
  %v205 = vunpack.c.l.b16 %v70
  %v206 = vunpack.c.l.b16 %v71
  %v207 = vunpack.c.l.b16 %v72
  %v208 = vunpack.c.l.b16 %v73
  %v209 = vunpack.c.l.b16 %v74
  %v210 = vunpack.c.l.b16 %v75
  %v211 = vunpack.c.l.b16 %v76
  %v212 = vunpack.c.l.b16 %v77
  %v213 = vunpack.c.l.b16 %v78
  %v214 = vunpack.c.l.b16 %v79
  %v215 = vunpack.c.l.b16 %v80
  %v216 = vunpack.c.l.b16 %v81
  %v217 = vpack.c.b16 %v154, %v153
  %v218 = vpack.c.b16 %v156, %v155
  %v219 = vpack.c.b16 %v158, %v157
  %v220 = vpack.c.b16 %v160, %v159
  %v221 = vpack.c.b16 %v162, %v161
  %v222 = vpack.c.b16 %v164, %v163
  %v223 = vpack.c.b16 %v166, %v165
  %v224 = vpack.c.b16 %v168, %v167
  %v225 = vpack.c.b16 %v170, %v169
  %v226 = vpack.c.b16 %v172, %v171
  %v227 = vpack.c.b16 %v174, %v173
  %v228 = vpack.c.b16 %v176, %v175
  %v229 = vpack.c.b16 %v178, %v177
  %v230 = vpack.c.b16 %v180, %v179
  %v231 = vpack.c.b16 %v182, %v181
  %v232 = vpack.c.b16 %v184, %v183
  %v233 = vpack.c.b16 %v186, %v185
  %v234 = vpack.c.b16 %v188, %v187
  %v235 = vpack.c.b16 %v190, %v189
  %v236 = vpack.c.b16 %v192, %v191
  %v237 = vpack.c.b16 %v194, %v193
  %v238 = vpack.c.b16 %v196, %v195
  %v239 = vpack.c.b16 %v198, %v197
  %v240 = vpack.c.b16 %v200, %v199
  %v241 = vpack.c.b16 %v202, %v201
  %v242 = vpack.c.b16 %v204, %v203
  %v243 = vpack.c.b16 %v206, %v205
  %v244 = vpack.c.b16 %v208, %v207
  %v245 = vpack.c.b16 %v210, %v209
  %v246 = vpack.c.b16 %v212, %v211
  %v247 = vpack.c.b16 %v214, %v213
  %v248 = vpack.c.b16 %v216, %v215
  %v256 = vunpack.c.l.b16 %v82
  %v257 = vunpack.c.l.b16 %v83
  %v258 = vunpack.c.l.b16 %v84
  %v259 = vunpack.c.l.b16 %v85
  %v260 = vunpack.c.l.b16 %v86
  %v261 = vunpack.c.l.b16 %v87
  %v262 = vunpack.c.l.b16 %v88
  %v263 = vpack.c.b16 %v257, %v256
  %v264 = vpack.c.b16 %v259, %v258
  %v265 = vpack.c.b16 %v261, %v260
  %v266 = vpack.c.b16 %v262, %v262
  %vm270 = vcmask 400384
  %v272 = vsel %vm270, %v217, 0
  %v275 = vsel %vm270, %v218, 0
  %v278 = vsel %vm270, %v219, 0
  %v281 = vsel %vm270, %v220, 0
  %v284 = vsel %vm270, %v221, 0
  %v287 = vsel %vm270, %v222, 0
  %v290 = vsel %vm270, %v223, 0
  %v293 = vsel %vm270, %v224, 0
  %v296 = vsel %vm270, %v225, 0
  %v299 = vsel %vm270, %v226, 0
  %v302 = vsel %vm270, %v227, 0
  %v305 = vsel %vm270, %v228, 0
  %v308 = vsel %vm270, %v229, 0
  %v311 = vsel %vm270, %v230, 0
  %v314 = vsel %vm270, %v231, 0
  %v317 = vsel %vm270, %v232, 0
  %v320 = vsel %vm270, %v233, 0
  %v323 = vsel %vm270, %v234, 0
  %v326 = vsel %vm270, %v235, 0
  %v329 = vsel %vm270, %v236, 0
  %v332 = vsel %vm270, %v237, 0
  %v335 = vsel %vm270, %v238, 0
  %v338 = vsel %vm270, %v239, 0
  %v341 = vsel %vm270, %v240, 0
  %v344 = vsel %vm270, %v241, 0
  %v347 = vsel %vm270, %v242, 0
  %v350 = vsel %vm270, %v243, 0
  %v353 = vsel %vm270, %v244, 0
  %v356 = vsel %vm270, %v245, 0
  %v359 = vsel %vm270, %v246, 0
  %v362 = vsel %vm270, %v247, 0
  %v365 = vsel %vm270, %v248, 0
  %vm367 = vcmask 1040384
  %v368 = vsel 0, 4294967295, 65535
  %v369 = vsel %vm367, %v368, 0
  %v371 = vand.u32 %v266, %v369
  %373 = vmatprep.subr.bf16.mxu0 0
  %374 = vmatpush1.bf16.msra.mxu0 %v263
  %375 = vmatprep.subr.bf16.mxu0 0
  %376 = vmatpush1.bf16.msra.mxu0 %v264
  %377 = vmatprep.subr.bf16.mxu0 0
  %378 = vmatpush1.bf16.msra.mxu0 %v265
  %379 = vmatprep.subr.bf16.mxu0 0
  %380 = vmatpush1.bf16.msra.mxu0 %v371
  %381 = vmatprep.subr.bf16.mxu0 0
  %382 = vmatpush1.bf16.msra.mxu0 0
  %383 = vmatprep.subr.bf16.mxu0 0
  %384 = vmatpush1.bf16.msra.mxu0 0
  %385 = vmatprep.subr.bf16.mxu0 0
  %386 = vmatpush1.bf16.msra.mxu0 0
  %387 = vmatprep.subr.bf16.mxu0 0
  %388 = vmatpush1.bf16.msra.mxu0 0
  %389 = vmatprep.subr.bf16.mxu0 0
  %390 = vmatpush1.bf16.msra.mxu0 0
  %391 = vmatprep.subr.bf16.mxu0 0
  %392 = vmatpush1.bf16.msra.mxu0 0
  %393 = vmatprep.subr.bf16.mxu0 0
  %394 = vmatpush1.bf16.msra.mxu0 0
  %395 = vmatprep.subr.bf16.mxu0 0
  %396 = vmatpush1.bf16.msra.mxu0 0
  %397 = vmatprep.subr.bf16.mxu0 0
  %398 = vmatpush1.bf16.msra.mxu0 0
  %399 = vmatprep.subr.bf16.mxu0 0
  %400 = vmatpush1.bf16.msra.mxu0 0
  %401 = vmatprep.subr.bf16.mxu0 0
  %402 = vmatpush1.bf16.msra.mxu0 0
  %403 = vmatprep.subr.bf16.mxu0 0
  %404 = vmatpush1.bf16.msra.mxu0 0
  %405 = vmatprep.mubr.bf16.mxu0 0
  %406 = vmatmul.mubr.bf16.gmra.mrb[0].mxu0 %v272
  %v407 = vpop.f32.mrb[0].mxu0
  %v408 = vadd.f32 0.0, %v407
  %v409 = vpop.f32.mrb[0].mxu0
  %v410 = vpop.f32.mrb[0].mxu0
  %v411 = vadd.f32 0.0, %v410
  %v412 = vpop.f32.mrb[0].mxu0
  %413 = vmatprep.mubr.bf16.mxu0 0
  %414 = vmatmul.mubr.bf16.gmra.mrb[0].mxu0 %v275
  %v415 = vpop.f32.mrb[0].mxu0
  %v416 = vadd.f32 0.0, %v415
  %v417 = vpop.f32.mrb[0].mxu0
  %v418 = vpop.f32.mrb[0].mxu0
  %v419 = vadd.f32 0.0, %v418
  %v420 = vpop.f32.mrb[0].mxu0
  %421 = vmatprep.mubr.bf16.mxu0 0
  %422 = vmatmul.mubr.bf16.gmra.mrb[0].mxu0 %v278
  %v423 = vpop.f32.mrb[0].mxu0
  %v424 = vadd.f32 0.0, %v423
  %v425 = vpop.f32.mrb[0].mxu0
  %v426 = vpop.f32.mrb[0].mxu0
  %v427 = vadd.f32 0.0, %v426
  %v428 = vpop.f32.mrb[0].mxu0
  %429 = vmatprep.mubr.bf16.mxu0 0
  %430 = vmatmul.mubr.bf16.gmra.mrb[0].mxu0 %v281
  %v431 = vpop.f32.mrb[0].mxu0
  %v432 = vadd.f32 0.0, %v431
  %v433 = vpop.f32.mrb[0].mxu0
  %v434 = vpop.f32.mrb[0].mxu0
  %v435 = vadd.f32 0.0, %v434
  %v436 = vpop.f32.mrb[0].mxu0
  %437 = vmatprep.mubr.bf16.mxu0 0
  %438 = vmatmul.mubr.bf16.gmra.mrb[0].mxu0 %v284
  %v439 = vpop.f32.mrb[0].mxu0
  %v440 = vadd.f32 0.0, %v439
  %v441 = vpop.f32.mrb[0].mxu0
  %v442 = vpop.f32.mrb[0].mxu0
  %v443 = vadd.f32 0.0, %v442
  %v444 = vpop.f32.mrb[0].mxu0
  %445 = vmatprep.mubr.bf16.mxu0 0
  %446 = vmatmul.mubr.bf16.gmra.mrb[0].mxu0 %v287
  %v447 = vpop.f32.mrb[0].mxu0
  %v448 = vadd.f32 0.0, %v447
  %v449 = vpop.f32.mrb[0].mxu0
  %v450 = vpop.f32.mrb[0].mxu0
  %v451 = vadd.f32 0.0, %v450
  %v452 = vpop.f32.mrb[0].mxu0
  %453 = vmatprep.mubr.bf16.mxu0 0
  %454 = vmatmul.mubr.bf16.gmra.mrb[0].mxu0 %v290
  %v455 = vpop.f32.mrb[0].mxu0
  %v456 = vadd.f32 0.0, %v455
  %v457 = vpop.f32.mrb[0].mxu0
  %v458 = vpop.f32.mrb[0].mxu0
  %v459 = vadd.f32 0.0, %v458
  %v460 = vpop.f32.mrb[0].mxu0
  %461 = vmatprep.mubr.bf16.mxu0 0
  %462 = vmatmul.mubr.bf16.gmra.mrb[0].mxu0 %v293
  %v463 = vpop.f32.mrb[0].mxu0
  %v464 = vadd.f32 0.0, %v463
  %v465 = vpop.f32.mrb[0].mxu0
  %v466 = vpop.f32.mrb[0].mxu0
  %v467 = vadd.f32 0.0, %v466
  %v468 = vpop.f32.mrb[0].mxu0
  %469 = vmatprep.mubr.bf16.mxu0 0
  %470 = vmatmul.mubr.bf16.gmra.mrb[0].mxu0 %v296
  %v471 = vpop.f32.mrb[0].mxu0
  %v472 = vadd.f32 0.0, %v471
  %v473 = vpop.f32.mrb[0].mxu0
  %v474 = vpop.f32.mrb[0].mxu0
  %v475 = vadd.f32 0.0, %v474
  %v476 = vpop.f32.mrb[0].mxu0
  %477 = vmatprep.mubr.bf16.mxu0 0
  %478 = vmatmul.mubr.bf16.gmra.mrb[0].mxu0 %v299
  %v479 = vpop.f32.mrb[0].mxu0
  %v480 = vadd.f32 0.0, %v479
  %v481 = vpop.f32.mrb[0].mxu0
  %v482 = vpop.f32.mrb[0].mxu0
  %v483 = vadd.f32 0.0, %v482
  %v484 = vpop.f32.mrb[0].mxu0
  %485 = vmatprep.mubr.bf16.mxu0 0
  %486 = vmatmul.mubr.bf16.gmra.mrb[0].mxu0 %v302
  %v487 = vpop.f32.mrb[0].mxu0
  %v488 = vadd.f32 0.0, %v487
  %v489 = vpop.f32.mrb[0].mxu0
  %v490 = vpop.f32.mrb[0].mxu0
  %v491 = vadd.f32 0.0, %v490
  %v492 = vpop.f32.mrb[0].mxu0
  %493 = vmatprep.mubr.bf16.mxu0 0
  %494 = vmatmul.mubr.bf16.gmra.mrb[0].mxu0 %v305
  %v495 = vpop.f32.mrb[0].mxu0
  %v496 = vadd.f32 0.0, %v495
  %v497 = vpop.f32.mrb[0].mxu0
  %v498 = vpop.f32.mrb[0].mxu0
  %v499 = vadd.f32 0.0, %v498
  %v500 = vpop.f32.mrb[0].mxu0
  %501 = vmatprep.mubr.bf16.mxu0 0
  %502 = vmatmul.mubr.bf16.gmra.mrb[0].mxu0 %v308
  %v503 = vpop.f32.mrb[0].mxu0
  %v504 = vadd.f32 0.0, %v503
  %v505 = vpop.f32.mrb[0].mxu0
  %v506 = vpop.f32.mrb[0].mxu0
  %v507 = vadd.f32 0.0, %v506
  %v508 = vpop.f32.mrb[0].mxu0
  %509 = vmatprep.mubr.bf16.mxu0 0
  %510 = vmatmul.mubr.bf16.gmra.mrb[0].mxu0 %v311
  %v511 = vpop.f32.mrb[0].mxu0
  %v512 = vadd.f32 0.0, %v511
  %v513 = vpop.f32.mrb[0].mxu0
  %v514 = vpop.f32.mrb[0].mxu0
  %v515 = vadd.f32 0.0, %v514
  %v516 = vpop.f32.mrb[0].mxu0
  %517 = vmatprep.mubr.bf16.mxu0 0
  %518 = vmatmul.mubr.bf16.gmra.mrb[0].mxu0 %v314
  %v519 = vpop.f32.mrb[0].mxu0
  %v520 = vadd.f32 0.0, %v519
  %v521 = vpop.f32.mrb[0].mxu0
  %v522 = vpop.f32.mrb[0].mxu0
  %v523 = vadd.f32 0.0, %v522
  %v524 = vpop.f32.mrb[0].mxu0
  %525 = vmatprep.mubr.bf16.mxu0 0
  %526 = vmatmul.mubr.bf16.gmra.mrb[0].mxu0 %v317
  %v527 = vpop.f32.mrb[0].mxu0
  %v528 = vadd.f32 0.0, %v527
  %v529 = vpop.f32.mrb[0].mxu0
  %v530 = vpop.f32.mrb[0].mxu0
  %v531 = vadd.f32 0.0, %v530
  %v532 = vpop.f32.mrb[0].mxu0
  %533 = vmatprep.mubr.bf16.mxu0 0
  %534 = vmatmul.mubr.bf16.gmra.mrb[0].mxu0 %v320
  %v535 = vpop.f32.mrb[0].mxu0
  %v536 = vadd.f32 0.0, %v535
  %v537 = vpop.f32.mrb[0].mxu0
  %v538 = vpop.f32.mrb[0].mxu0
  %v539 = vadd.f32 0.0, %v538
  %v540 = vpop.f32.mrb[0].mxu0
  %541 = vmatprep.mubr.bf16.mxu0 0
  %542 = vmatmul.mubr.bf16.gmra.mrb[0].mxu0 %v323
  %v543 = vpop.f32.mrb[0].mxu0
  %v544 = vadd.f32 0.0, %v543
  %v545 = vpop.f32.mrb[0].mxu0
  %v546 = vpop.f32.mrb[0].mxu0
  %v547 = vadd.f32 0.0, %v546
  %v548 = vpop.f32.mrb[0].mxu0
  %549 = vmatprep.mubr.bf16.mxu0 0
  %550 = vmatmul.mubr.bf16.gmra.mrb[0].mxu0 %v326
  %v551 = vpop.f32.mrb[0].mxu0
  %v552 = vadd.f32 0.0, %v551
  %v553 = vpop.f32.mrb[0].mxu0
  %v554 = vpop.f32.mrb[0].mxu0
  %v555 = vadd.f32 0.0, %v554
  %v556 = vpop.f32.mrb[0].mxu0
  %557 = vmatprep.mubr.bf16.mxu0 0
  %558 = vmatmul.mubr.bf16.gmra.mrb[0].mxu0 %v329
  %v559 = vpop.f32.mrb[0].mxu0
  %v560 = vadd.f32 0.0, %v559
  %v561 = vpop.f32.mrb[0].mxu0
  %v562 = vpop.f32.mrb[0].mxu0
  %v563 = vadd.f32 0.0, %v562
  %v564 = vpop.f32.mrb[0].mxu0
  %565 = vmatprep.mubr.bf16.mxu0 0
  %566 = vmatmul.mubr.bf16.gmra.mrb[0].mxu0 %v332
  %v567 = vpop.f32.mrb[0].mxu0
  %v568 = vadd.f32 0.0, %v567
  %v569 = vpop.f32.mrb[0].mxu0
  %v570 = vpop.f32.mrb[0].mxu0
  %v571 = vadd.f32 0.0, %v570
  %v572 = vpop.f32.mrb[0].mxu0
  %573 = vmatprep.mubr.bf16.mxu0 0
  %574 = vmatmul.mubr.bf16.gmra.mrb[0].mxu0 %v335
  %v575 = vpop.f32.mrb[0].mxu0
  %v576 = vadd.f32 0.0, %v575
  %v577 = vpop.f32.mrb[0].mxu0
  %v578 = vpop.f32.mrb[0].mxu0
  %v579 = vadd.f32 0.0, %v578
  %v580 = vpop.f32.mrb[0].mxu0
  %581 = vmatprep.mubr.bf16.mxu0 0
  %582 = vmatmul.mubr.bf16.gmra.mrb[0].mxu0 %v338
  %v583 = vpop.f32.mrb[0].mxu0
  %v584 = vadd.f32 0.0, %v583
  %v585 = vpop.f32.mrb[0].mxu0
  %v586 = vpop.f32.mrb[0].mxu0
  %v587 = vadd.f32 0.0, %v586
  %v588 = vpop.f32.mrb[0].mxu0
  %589 = vmatprep.mubr.bf16.mxu0 0
  %590 = vmatmul.mubr.bf16.gmra.mrb[0].mxu0 %v341
  %v591 = vpop.f32.mrb[0].mxu0
  %v592 = vadd.f32 0.0, %v591
  %v593 = vpop.f32.mrb[0].mxu0
  %v594 = vpop.f32.mrb[0].mxu0
  %v595 = vadd.f32 0.0, %v594
  %v596 = vpop.f32.mrb[0].mxu0
  %597 = vmatprep.mubr.bf16.mxu0 0
  %598 = vmatmul.mubr.bf16.gmra.mrb[0].mxu0 %v344
  %v599 = vpop.f32.mrb[0].mxu0
  %v600 = vadd.f32 0.0, %v599
  %v601 = vpop.f32.mrb[0].mxu0
  %v602 = vpop.f32.mrb[0].mxu0
  %v603 = vadd.f32 0.0, %v602
  %v604 = vpop.f32.mrb[0].mxu0
  %605 = vmatprep.mubr.bf16.mxu0 0
  %606 = vmatmul.mubr.bf16.gmra.mrb[0].mxu0 %v347
  %v607 = vpop.f32.mrb[0].mxu0
  %v608 = vadd.f32 0.0, %v607
  %v609 = vpop.f32.mrb[0].mxu0
  %v610 = vpop.f32.mrb[0].mxu0
  %v611 = vadd.f32 0.0, %v610
  %v612 = vpop.f32.mrb[0].mxu0
  %613 = vmatprep.mubr.bf16.mxu0 0
  %614 = vmatmul.mubr.bf16.gmra.mrb[0].mxu0 %v350
  %v615 = vpop.f32.mrb[0].mxu0
  %v616 = vadd.f32 0.0, %v615
  %v617 = vpop.f32.mrb[0].mxu0
  %v618 = vpop.f32.mrb[0].mxu0
  %v619 = vadd.f32 0.0, %v618
  %v620 = vpop.f32.mrb[0].mxu0
  %621 = vmatprep.mubr.bf16.mxu0 0
  %622 = vmatmul.mubr.bf16.gmra.mrb[0].mxu0 %v353
  %v623 = vpop.f32.mrb[0].mxu0
  %v624 = vadd.f32 0.0, %v623
  %v625 = vpop.f32.mrb[0].mxu0
  %v626 = vpop.f32.mrb[0].mxu0
  %v627 = vadd.f32 0.0, %v626
  %v628 = vpop.f32.mrb[0].mxu0
  %629 = vmatprep.mubr.bf16.mxu0 0
  %630 = vmatmul.mubr.bf16.gmra.mrb[0].mxu0 %v356
  %v631 = vpop.f32.mrb[0].mxu0
  %v632 = vadd.f32 0.0, %v631
  %v633 = vpop.f32.mrb[0].mxu0
  %v634 = vpop.f32.mrb[0].mxu0
  %v635 = vadd.f32 0.0, %v634
  %v636 = vpop.f32.mrb[0].mxu0
  %637 = vmatprep.mubr.bf16.mxu0 0
  %638 = vmatmul.mubr.bf16.gmra.mrb[0].mxu0 %v359
  %v639 = vpop.f32.mrb[0].mxu0
  %v640 = vadd.f32 0.0, %v639
  %v641 = vpop.f32.mrb[0].mxu0
  %v642 = vpop.f32.mrb[0].mxu0
  %v643 = vadd.f32 0.0, %v642
  %v644 = vpop.f32.mrb[0].mxu0
  %645 = vmatprep.mubr.bf16.mxu0 0
  %646 = vmatmul.mubr.bf16.gmra.mrb[0].mxu0 %v362
  %v647 = vpop.f32.mrb[0].mxu0
  %v648 = vadd.f32 0.0, %v647
  %v649 = vpop.f32.mrb[0].mxu0
  %v650 = vpop.f32.mrb[0].mxu0
  %v651 = vadd.f32 0.0, %v650
  %v652 = vpop.f32.mrb[0].mxu0
  %653 = vmatprep.mubr.bf16.mxu0 0
  %654 = vmatmul.mubr.bf16.gmra.mrb[0].mxu0 %v365
  %v655 = vpop.f32.mrb[0].mxu0
  %v656 = vadd.f32 0.0, %v655
  %v657 = vpop.f32.mrb[0].mxu0
  %v658 = vpop.f32.mrb[0].mxu0
  %v659 = vadd.f32 0.0, %v658
  %v660 = vpop.f32.mrb[0].mxu0
  %661 = vdwg.mxu0
  %vm662 = vcmask 523264
  %v663 = vsel %vm662, %v408, 0.0
  %v664 = vsel %vm662, %v411, 0.0
  %v665 = vadd.f32 %v663, %v664
  %v666 = vsel %vm662, %v416, 0.0
  %v667 = vadd.f32 %v665, %v666
  %v668 = vsel %vm662, %v419, 0.0
  %v669 = vadd.f32 %v667, %v668
  %v670 = vsel %vm662, %v424, 0.0
  %v671 = vadd.f32 %v669, %v670
  %v672 = vsel %vm662, %v427, 0.0
  %v673 = vadd.f32 %v671, %v672
  %v674 = vsel %vm662, %v432, 0.0
  %v675 = vadd.f32 %v673, %v674
  %v676 = vsel %vm662, %v435, 0.0
  %v677 = vadd.f32 %v675, %v676
  %v678 = vsel %vm662, %v440, 0.0
  %v679 = vadd.f32 %v677, %v678
  %v680 = vsel %vm662, %v443, 0.0
  %v681 = vadd.f32 %v679, %v680
  %v682 = vsel %vm662, %v448, 0.0
  %v683 = vadd.f32 %v681, %v682
  %v684 = vsel %vm662, %v451, 0.0
  %v685 = vadd.f32 %v683, %v684
  %v686 = vsel %vm662, %v456, 0.0
  %v687 = vadd.f32 %v685, %v686
  %v688 = vsel %vm662, %v459, 0.0
  %v689 = vadd.f32 %v687, %v688
  %v690 = vsel %vm662, %v464, 0.0
  %v691 = vadd.f32 %v689, %v690
  %v692 = vsel %vm662, %v467, 0.0
  %v693 = vadd.f32 %v691, %v692
  %v694 = vsel %vm662, %v472, 0.0
  %v695 = vadd.f32 %v693, %v694
  %v696 = vsel %vm662, %v475, 0.0
  %v697 = vadd.f32 %v695, %v696
  %v698 = vsel %vm662, %v480, 0.0
  %v699 = vadd.f32 %v697, %v698
  %v700 = vsel %vm662, %v483, 0.0
  %v701 = vadd.f32 %v699, %v700
  %v702 = vsel %vm662, %v488, 0.0
  %v703 = vadd.f32 %v701, %v702
  %v704 = vsel %vm662, %v491, 0.0
  %v705 = vadd.f32 %v703, %v704
  %v706 = vsel %vm662, %v496, 0.0
  %v707 = vadd.f32 %v705, %v706
  %v708 = vsel %vm662, %v499, 0.0
  %v709 = vadd.f32 %v707, %v708
  %v710 = vsel %vm662, %v504, 0.0
  %v711 = vadd.f32 %v709, %v710
  %v712 = vsel %vm662, %v507, 0.0
  %v713 = vadd.f32 %v711, %v712
  %v714 = vsel %vm662, %v512, 0.0
  %v715 = vadd.f32 %v713, %v714
  %v716 = vsel %vm662, %v515, 0.0
  %v717 = vadd.f32 %v715, %v716
  %v718 = vsel %vm662, %v520, 0.0
  %v719 = vadd.f32 %v717, %v718
  %v720 = vsel %vm662, %v523, 0.0
  %v721 = vadd.f32 %v719, %v720
  %v722 = vsel %vm662, %v528, 0.0
  %v723 = vadd.f32 %v721, %v722
  %v724 = vsel %vm662, %v531, 0.0
  %v725 = vadd.f32 %v723, %v724
  %v726 = vsel %vm662, %v536, 0.0
  %v727 = vadd.f32 %v725, %v726
  %v728 = vsel %vm662, %v539, 0.0
  %v729 = vadd.f32 %v727, %v728
  %v730 = vsel %vm662, %v544, 0.0
  %v731 = vadd.f32 %v729, %v730
  %v732 = vsel %vm662, %v547, 0.0
  %v733 = vadd.f32 %v731, %v732
  %v734 = vsel %vm662, %v552, 0.0
  %v735 = vadd.f32 %v733, %v734
  %v736 = vsel %vm662, %v555, 0.0
  %v737 = vadd.f32 %v735, %v736
  %v738 = vsel %vm662, %v560, 0.0
  %v739 = vadd.f32 %v737, %v738
  %v740 = vsel %vm662, %v563, 0.0
  %v741 = vadd.f32 %v739, %v740
  %v742 = vsel %vm662, %v568, 0.0
  %v743 = vadd.f32 %v741, %v742
  %v744 = vsel %vm662, %v571, 0.0
  %v745 = vadd.f32 %v743, %v744
  %v746 = vsel %vm662, %v576, 0.0
  %v747 = vadd.f32 %v745, %v746
  %v748 = vsel %vm662, %v579, 0.0
  %v749 = vadd.f32 %v747, %v748
  %v750 = vsel %vm662, %v584, 0.0
  %v751 = vadd.f32 %v749, %v750
  %v752 = vsel %vm662, %v587, 0.0
  %v753 = vadd.f32 %v751, %v752
  %v754 = vsel %vm662, %v592, 0.0
  %v755 = vadd.f32 %v753, %v754
  %v756 = vsel %vm662, %v595, 0.0
  %v757 = vadd.f32 %v755, %v756
  %v758 = vsel %vm662, %v600, 0.0
  %v759 = vadd.f32 %v757, %v758
  %v760 = vsel %vm662, %v603, 0.0
  %v761 = vadd.f32 %v759, %v760
  %v762 = vsel %vm662, %v608, 0.0
  %v763 = vadd.f32 %v761, %v762
  %v764 = vsel %vm662, %v611, 0.0
  %v765 = vadd.f32 %v763, %v764
  %v766 = vsel %vm662, %v616, 0.0
  %v767 = vadd.f32 %v765, %v766
  %v768 = vsel %vm662, %v619, 0.0
  %v769 = vadd.f32 %v767, %v768
  %v770 = vsel %vm662, %v624, 0.0
  %v771 = vadd.f32 %v769, %v770
  %v772 = vsel %vm662, %v627, 0.0
  %v773 = vadd.f32 %v771, %v772
  %v774 = vsel %vm662, %v632, 0.0
  %v775 = vadd.f32 %v773, %v774
  %v776 = vsel %vm662, %v635, 0.0
  %v777 = vadd.f32 %v775, %v776
  %v778 = vsel %vm662, %v640, 0.0
  %v779 = vadd.f32 %v777, %v778
  %v780 = vsel %vm662, %v643, 0.0
  %v781 = vadd.f32 %v779, %v780
  %v782 = vsel %vm662, %v648, 0.0
  %v783 = vadd.f32 %v781, %v782
  %v784 = vsel %vm662, %v651, 0.0
  %v785 = vadd.f32 %v783, %v784
  %v786 = vsel %vm662, %v656, 0.0
  %v787 = vadd.f32 %v785, %v786
  %v788 = vsel %vm662, %v659, 0.0
  %v789 = vadd.f32 %v787, %v788
  %v790 = vrot.slane %v789, 4
  %v791 = vadd.f32 %v789, %v790
  %v792 = vrot.slane %v791, 2
  %v793 = vadd.f32 %v791, %v792
  %v794 = vrot.slane %v793, 1
  %v795 = vadd.f32 %v793, %v794
  %v796 = vmul.f32 %v795, 0.001953125
  %v797 = vmul.f32 %v408, %v408
  %v798 = vmul.f32 %v411, %v411
  %v799 = vmul.f32 %v416, %v416
  %v800 = vmul.f32 %v419, %v419
  %v801 = vmul.f32 %v424, %v424
  %v802 = vmul.f32 %v427, %v427
  %v803 = vmul.f32 %v432, %v432
  %v804 = vmul.f32 %v435, %v435
  %v805 = vmul.f32 %v440, %v440
  %v806 = vmul.f32 %v443, %v443
  %v807 = vmul.f32 %v448, %v448
  %v808 = vmul.f32 %v451, %v451
  %v809 = vmul.f32 %v456, %v456
  %v810 = vmul.f32 %v459, %v459
  %v811 = vmul.f32 %v464, %v464
  %v812 = vmul.f32 %v467, %v467
  %v813 = vmul.f32 %v472, %v472
  %v814 = vmul.f32 %v475, %v475
  %v815 = vmul.f32 %v480, %v480
  %v816 = vmul.f32 %v483, %v483
  %v817 = vmul.f32 %v488, %v488
  %v818 = vmul.f32 %v491, %v491
  %v819 = vmul.f32 %v496, %v496
  %v820 = vmul.f32 %v499, %v499
  %v821 = vmul.f32 %v504, %v504
  %v822 = vmul.f32 %v507, %v507
  %v823 = vmul.f32 %v512, %v512
  %v824 = vmul.f32 %v515, %v515
  %v825 = vmul.f32 %v520, %v520
  %v826 = vmul.f32 %v523, %v523
  %v827 = vmul.f32 %v528, %v528
  %v828 = vmul.f32 %v531, %v531
  %v829 = vmul.f32 %v536, %v536
  %v830 = vmul.f32 %v539, %v539
  %v831 = vmul.f32 %v544, %v544
  %v832 = vmul.f32 %v547, %v547
  %v833 = vmul.f32 %v552, %v552
  %v834 = vmul.f32 %v555, %v555
  %v835 = vmul.f32 %v560, %v560
  %v836 = vmul.f32 %v563, %v563
  %v837 = vmul.f32 %v568, %v568
  %v838 = vmul.f32 %v571, %v571
  %v839 = vmul.f32 %v576, %v576
  %v840 = vmul.f32 %v579, %v579
  %v841 = vmul.f32 %v584, %v584
  %v842 = vmul.f32 %v587, %v587
  %v843 = vmul.f32 %v592, %v592
  %v844 = vmul.f32 %v595, %v595
  %v845 = vmul.f32 %v600, %v600
  %v846 = vmul.f32 %v603, %v603
  %v847 = vmul.f32 %v608, %v608
  %v848 = vmul.f32 %v611, %v611
  %v849 = vmul.f32 %v616, %v616
  %v850 = vmul.f32 %v619, %v619
  %v851 = vmul.f32 %v624, %v624
  %v852 = vmul.f32 %v627, %v627
  %v853 = vmul.f32 %v632, %v632
  %v854 = vmul.f32 %v635, %v635
  %v855 = vmul.f32 %v640, %v640
  %v856 = vmul.f32 %v643, %v643
  %v857 = vmul.f32 %v648, %v648
  %v858 = vmul.f32 %v651, %v651
  %v859 = vmul.f32 %v656, %v656
  %v860 = vmul.f32 %v659, %v659
  %v861 = vsel %vm662, %v797, 0.0
  %v862 = vsel %vm662, %v798, 0.0
  %v863 = vadd.f32 %v861, %v862
  %v864 = vsel %vm662, %v799, 0.0
  %v865 = vadd.f32 %v863, %v864
  %v866 = vsel %vm662, %v800, 0.0
  %v867 = vadd.f32 %v865, %v866
  %v868 = vsel %vm662, %v801, 0.0
  %v869 = vadd.f32 %v867, %v868
  %v870 = vsel %vm662, %v802, 0.0
  %v871 = vadd.f32 %v869, %v870
  %v872 = vsel %vm662, %v803, 0.0
  %v873 = vadd.f32 %v871, %v872
  %v874 = vsel %vm662, %v804, 0.0
  %v875 = vadd.f32 %v873, %v874
  %v876 = vsel %vm662, %v805, 0.0
  %v877 = vadd.f32 %v875, %v876
  %v878 = vsel %vm662, %v806, 0.0
  %v879 = vadd.f32 %v877, %v878
  %v880 = vsel %vm662, %v807, 0.0
  %v881 = vadd.f32 %v879, %v880
  %v882 = vsel %vm662, %v808, 0.0
  %v883 = vadd.f32 %v881, %v882
  %v884 = vsel %vm662, %v809, 0.0
  %v885 = vadd.f32 %v883, %v884
  %v886 = vsel %vm662, %v810, 0.0
  %v887 = vadd.f32 %v885, %v886
  %v888 = vsel %vm662, %v811, 0.0
  %v889 = vadd.f32 %v887, %v888
  %v890 = vsel %vm662, %v812, 0.0
  %v891 = vadd.f32 %v889, %v890
  %v892 = vsel %vm662, %v813, 0.0
  %v893 = vadd.f32 %v891, %v892
  %v894 = vsel %vm662, %v814, 0.0
  %v895 = vadd.f32 %v893, %v894
  %v896 = vsel %vm662, %v815, 0.0
  %v897 = vadd.f32 %v895, %v896
  %v898 = vsel %vm662, %v816, 0.0
  %v899 = vadd.f32 %v897, %v898
  %v900 = vsel %vm662, %v817, 0.0
  %v901 = vadd.f32 %v899, %v900
  %v902 = vsel %vm662, %v818, 0.0
  %v903 = vadd.f32 %v901, %v902
  %v904 = vsel %vm662, %v819, 0.0
  %v905 = vadd.f32 %v903, %v904
  %v906 = vsel %vm662, %v820, 0.0
  %v907 = vadd.f32 %v905, %v906
  %v908 = vsel %vm662, %v821, 0.0
  %v909 = vadd.f32 %v907, %v908
  %v910 = vsel %vm662, %v822, 0.0
  %v911 = vadd.f32 %v909, %v910
  %v912 = vsel %vm662, %v823, 0.0
  %v913 = vadd.f32 %v911, %v912
  %v914 = vsel %vm662, %v824, 0.0
  %v915 = vadd.f32 %v913, %v914
  %v916 = vsel %vm662, %v825, 0.0
  %v917 = vadd.f32 %v915, %v916
  %v918 = vsel %vm662, %v826, 0.0
  %v919 = vadd.f32 %v917, %v918
  %v920 = vsel %vm662, %v827, 0.0
  %v921 = vadd.f32 %v919, %v920
  %v922 = vsel %vm662, %v828, 0.0
  %v923 = vadd.f32 %v921, %v922
  %v924 = vsel %vm662, %v829, 0.0
  %v925 = vadd.f32 %v923, %v924
  %v926 = vsel %vm662, %v830, 0.0
  %v927 = vadd.f32 %v925, %v926
  %v928 = vsel %vm662, %v831, 0.0
  %v929 = vadd.f32 %v927, %v928
  %v930 = vsel %vm662, %v832, 0.0
  %v931 = vadd.f32 %v929, %v930
  %v932 = vsel %vm662, %v833, 0.0
  %v933 = vadd.f32 %v931, %v932
  %v934 = vsel %vm662, %v834, 0.0
  %v935 = vadd.f32 %v933, %v934
  %v936 = vsel %vm662, %v835, 0.0
  %v937 = vadd.f32 %v935, %v936
  %v938 = vsel %vm662, %v836, 0.0
  %v939 = vadd.f32 %v937, %v938
  %v940 = vsel %vm662, %v837, 0.0
  %v941 = vadd.f32 %v939, %v940
  %v942 = vsel %vm662, %v838, 0.0
  %v943 = vadd.f32 %v941, %v942
  %v944 = vsel %vm662, %v839, 0.0
  %v945 = vadd.f32 %v943, %v944
  %v946 = vsel %vm662, %v840, 0.0
  %v947 = vadd.f32 %v945, %v946
  %v948 = vsel %vm662, %v841, 0.0
  %v949 = vadd.f32 %v947, %v948
  %v950 = vsel %vm662, %v842, 0.0
  %v951 = vadd.f32 %v949, %v950
  %v952 = vsel %vm662, %v843, 0.0
  %v953 = vadd.f32 %v951, %v952
  %v954 = vsel %vm662, %v844, 0.0
  %v955 = vadd.f32 %v953, %v954
  %v956 = vsel %vm662, %v845, 0.0
  %v957 = vadd.f32 %v955, %v956
  %v958 = vsel %vm662, %v846, 0.0
  %v959 = vadd.f32 %v957, %v958
  %v960 = vsel %vm662, %v847, 0.0
  %v961 = vadd.f32 %v959, %v960
  %v962 = vsel %vm662, %v848, 0.0
  %v963 = vadd.f32 %v961, %v962
  %v964 = vsel %vm662, %v849, 0.0
  %v965 = vadd.f32 %v963, %v964
  %v966 = vsel %vm662, %v850, 0.0
  %v967 = vadd.f32 %v965, %v966
  %v968 = vsel %vm662, %v851, 0.0
  %v969 = vadd.f32 %v967, %v968
  %v970 = vsel %vm662, %v852, 0.0
  %v971 = vadd.f32 %v969, %v970
  %v972 = vsel %vm662, %v853, 0.0
  %v973 = vadd.f32 %v971, %v972
  %v974 = vsel %vm662, %v854, 0.0
  %v975 = vadd.f32 %v973, %v974
  %v976 = vsel %vm662, %v855, 0.0
  %v977 = vadd.f32 %v975, %v976
  %v978 = vsel %vm662, %v856, 0.0
  %v979 = vadd.f32 %v977, %v978
  %v980 = vsel %vm662, %v857, 0.0
  %v981 = vadd.f32 %v979, %v980
  %v982 = vsel %vm662, %v858, 0.0
  %v983 = vadd.f32 %v981, %v982
  %v984 = vsel %vm662, %v859, 0.0
  %v985 = vadd.f32 %v983, %v984
  %v986 = vsel %vm662, %v860, 0.0
  %v987 = vadd.f32 %v985, %v986
  %v988 = vrot.slane %v987, 4
  %v989 = vadd.f32 %v987, %v988
  %v990 = vrot.slane %v989, 2
  %v991 = vadd.f32 %v989, %v990
  %v992 = vrot.slane %v991, 1
  %v993 = vadd.f32 %v991, %v992
  %v994 = vmul.f32 %v993, 0.001953125
  %v995 = vmul.f32 %v796, %v796
  %v996 = vsub.f32 %v994, %v995
  %v997 = vmax.f32 %v996, 0.0
  %v998 = vsub.f32 %v408, %v796
  %v999 = vsub.f32 %v411, %v796
  %v1000 = vsub.f32 %v416, %v796
  %v1001 = vsub.f32 %v419, %v796
  %v1002 = vsub.f32 %v424, %v796
  %v1003 = vsub.f32 %v427, %v796
  %v1004 = vsub.f32 %v432, %v796
  %v1005 = vsub.f32 %v435, %v796
  %v1006 = vsub.f32 %v440, %v796
  %v1007 = vsub.f32 %v443, %v796
  %v1008 = vsub.f32 %v448, %v796
  %v1009 = vsub.f32 %v451, %v796
  %v1010 = vsub.f32 %v456, %v796
  %v1011 = vsub.f32 %v459, %v796
  %v1012 = vsub.f32 %v464, %v796
  %v1013 = vsub.f32 %v467, %v796
  %v1014 = vsub.f32 %v472, %v796
  %v1015 = vsub.f32 %v475, %v796
  %v1016 = vsub.f32 %v480, %v796
  %v1017 = vsub.f32 %v483, %v796
  %v1018 = vsub.f32 %v488, %v796
  %v1019 = vsub.f32 %v491, %v796
  %v1020 = vsub.f32 %v496, %v796
  %v1021 = vsub.f32 %v499, %v796
  %v1022 = vsub.f32 %v504, %v796
  %v1023 = vsub.f32 %v507, %v796
  %v1024 = vsub.f32 %v512, %v796
  %v1025 = vsub.f32 %v515, %v796
  %v1026 = vsub.f32 %v520, %v796
  %v1027 = vsub.f32 %v523, %v796
  %v1028 = vsub.f32 %v528, %v796
  %v1029 = vsub.f32 %v531, %v796
  %v1030 = vsub.f32 %v536, %v796
  %v1031 = vsub.f32 %v539, %v796
  %v1032 = vsub.f32 %v544, %v796
  %v1033 = vsub.f32 %v547, %v796
  %v1034 = vsub.f32 %v552, %v796
  %v1035 = vsub.f32 %v555, %v796
  %v1036 = vsub.f32 %v560, %v796
  %v1037 = vsub.f32 %v563, %v796
  %v1038 = vsub.f32 %v568, %v796
  %v1039 = vsub.f32 %v571, %v796
  %v1040 = vsub.f32 %v576, %v796
  %v1041 = vsub.f32 %v579, %v796
  %v1042 = vsub.f32 %v584, %v796
  %v1043 = vsub.f32 %v587, %v796
  %v1044 = vsub.f32 %v592, %v796
  %v1045 = vsub.f32 %v595, %v796
  %v1046 = vsub.f32 %v600, %v796
  %v1047 = vsub.f32 %v603, %v796
  %v1048 = vsub.f32 %v608, %v796
  %v1049 = vsub.f32 %v611, %v796
  %v1050 = vsub.f32 %v616, %v796
  %v1051 = vsub.f32 %v619, %v796
  %v1052 = vsub.f32 %v624, %v796
  %v1053 = vsub.f32 %v627, %v796
  %v1054 = vsub.f32 %v632, %v796
  %v1055 = vsub.f32 %v635, %v796
  %v1056 = vsub.f32 %v640, %v796
  %v1057 = vsub.f32 %v643, %v796
  %v1058 = vsub.f32 %v648, %v796
  %v1059 = vsub.f32 %v651, %v796
  %v1060 = vsub.f32 %v656, %v796
  %v1061 = vsub.f32 %v659, %v796
  %v1062 = vadd.f32 %v997, 1e-05
  %v1063 = vrsqrt.pop %v1062
  %v1064 = vmul.f32 %v998, %v1063
  %v1065 = vmul.f32 %v999, %v1063
  %v1066 = vmul.f32 %v1000, %v1063
  %v1067 = vmul.f32 %v1001, %v1063
  %v1068 = vmul.f32 %v1002, %v1063
  %v1069 = vmul.f32 %v1003, %v1063
  %v1070 = vmul.f32 %v1004, %v1063
  %v1071 = vmul.f32 %v1005, %v1063
  %v1072 = vmul.f32 %v1006, %v1063
  %v1073 = vmul.f32 %v1007, %v1063
  %v1074 = vmul.f32 %v1008, %v1063
  %v1075 = vmul.f32 %v1009, %v1063
  %v1076 = vmul.f32 %v1010, %v1063
  %v1077 = vmul.f32 %v1011, %v1063
  %v1078 = vmul.f32 %v1012, %v1063
  %v1079 = vmul.f32 %v1013, %v1063
  %v1080 = vmul.f32 %v1014, %v1063
  %v1081 = vmul.f32 %v1015, %v1063
  %v1082 = vmul.f32 %v1016, %v1063
  %v1083 = vmul.f32 %v1017, %v1063
  %v1084 = vmul.f32 %v1018, %v1063
  %v1085 = vmul.f32 %v1019, %v1063
  %v1086 = vmul.f32 %v1020, %v1063
  %v1087 = vmul.f32 %v1021, %v1063
  %v1088 = vmul.f32 %v1022, %v1063
  %v1089 = vmul.f32 %v1023, %v1063
  %v1090 = vmul.f32 %v1024, %v1063
  %v1091 = vmul.f32 %v1025, %v1063
  %v1092 = vmul.f32 %v1026, %v1063
  %v1093 = vmul.f32 %v1027, %v1063
  %v1094 = vmul.f32 %v1028, %v1063
  %v1095 = vmul.f32 %v1029, %v1063
  %v1096 = vmul.f32 %v1030, %v1063
  %v1097 = vmul.f32 %v1031, %v1063
  %v1098 = vmul.f32 %v1032, %v1063
  %v1099 = vmul.f32 %v1033, %v1063
  %v1100 = vmul.f32 %v1034, %v1063
  %v1101 = vmul.f32 %v1035, %v1063
  %v1102 = vmul.f32 %v1036, %v1063
  %v1103 = vmul.f32 %v1037, %v1063
  %v1104 = vmul.f32 %v1038, %v1063
  %v1105 = vmul.f32 %v1039, %v1063
  %v1106 = vmul.f32 %v1040, %v1063
  %v1107 = vmul.f32 %v1041, %v1063
  %v1108 = vmul.f32 %v1042, %v1063
  %v1109 = vmul.f32 %v1043, %v1063
  %v1110 = vmul.f32 %v1044, %v1063
  %v1111 = vmul.f32 %v1045, %v1063
  %v1112 = vmul.f32 %v1046, %v1063
  %v1113 = vmul.f32 %v1047, %v1063
  %v1114 = vmul.f32 %v1048, %v1063
  %v1115 = vmul.f32 %v1049, %v1063
  %v1116 = vmul.f32 %v1050, %v1063
  %v1117 = vmul.f32 %v1051, %v1063
  %v1118 = vmul.f32 %v1052, %v1063
  %v1119 = vmul.f32 %v1053, %v1063
  %v1120 = vmul.f32 %v1054, %v1063
  %v1121 = vmul.f32 %v1055, %v1063
  %v1122 = vmul.f32 %v1056, %v1063
  %v1123 = vmul.f32 %v1057, %v1063
  %v1124 = vmul.f32 %v1058, %v1063
  %v1125 = vmul.f32 %v1059, %v1063
  %v1126 = vmul.f32 %v1060, %v1063
  %v1127 = vmul.f32 %v1061, %v1063
  %v1128 = vld [vmem:[%s2] sm:$0x1]
  %v1130 = vlaneseq
  %v1131 = vshrl.u32 %v1130, 7
  %v1132 = vsub.s32 0, %v1131
  %v1133 = vrot.slane %v1128, %v1132
  %v1135 = vmul.f32 %v1064, %v1133
  %v1136 = vmul.f32 %v1065, %v1133
  %v1137 = vmul.f32 %v1066, %v1133
  %v1138 = vmul.f32 %v1067, %v1133
  %v1139 = vmul.f32 %v1068, %v1133
  %v1140 = vmul.f32 %v1069, %v1133
  %v1141 = vmul.f32 %v1070, %v1133
  %v1142 = vmul.f32 %v1071, %v1133
  %v1143 = vmul.f32 %v1072, %v1133
  %v1144 = vmul.f32 %v1073, %v1133
  %v1145 = vmul.f32 %v1074, %v1133
  %v1146 = vmul.f32 %v1075, %v1133
  %v1147 = vmul.f32 %v1076, %v1133
  %v1148 = vmul.f32 %v1077, %v1133
  %v1149 = vmul.f32 %v1078, %v1133
  %v1150 = vmul.f32 %v1079, %v1133
  %v1151 = vmul.f32 %v1080, %v1133
  %v1152 = vmul.f32 %v1081, %v1133
  %v1153 = vmul.f32 %v1082, %v1133
  %v1154 = vmul.f32 %v1083, %v1133
  %v1155 = vmul.f32 %v1084, %v1133
  %v1156 = vmul.f32 %v1085, %v1133
  %v1157 = vmul.f32 %v1086, %v1133
  %v1158 = vmul.f32 %v1087, %v1133
  %v1159 = vmul.f32 %v1088, %v1133
  %v1160 = vmul.f32 %v1089, %v1133
  %v1161 = vmul.f32 %v1090, %v1133
  %v1162 = vmul.f32 %v1091, %v1133
  %v1163 = vmul.f32 %v1092, %v1133
  %v1164 = vmul.f32 %v1093, %v1133
  %v1165 = vmul.f32 %v1094, %v1133
  %v1166 = vmul.f32 %v1095, %v1133
  %v1167 = vmul.f32 %v1096, %v1133
  %v1168 = vmul.f32 %v1097, %v1133
  %v1169 = vmul.f32 %v1098, %v1133
  %v1170 = vmul.f32 %v1099, %v1133
  %v1171 = vmul.f32 %v1100, %v1133
  %v1172 = vmul.f32 %v1101, %v1133
  %v1173 = vmul.f32 %v1102, %v1133
  %v1174 = vmul.f32 %v1103, %v1133
  %v1175 = vmul.f32 %v1104, %v1133
  %v1176 = vmul.f32 %v1105, %v1133
  %v1177 = vmul.f32 %v1106, %v1133
  %v1178 = vmul.f32 %v1107, %v1133
  %v1179 = vmul.f32 %v1108, %v1133
  %v1180 = vmul.f32 %v1109, %v1133
  %v1181 = vmul.f32 %v1110, %v1133
  %v1182 = vmul.f32 %v1111, %v1133
  %v1183 = vmul.f32 %v1112, %v1133
  %v1184 = vmul.f32 %v1113, %v1133
  %v1185 = vmul.f32 %v1114, %v1133
  %v1186 = vmul.f32 %v1115, %v1133
  %v1187 = vmul.f32 %v1116, %v1133
  %v1188 = vmul.f32 %v1117, %v1133
  %v1189 = vmul.f32 %v1118, %v1133
  %v1190 = vmul.f32 %v1119, %v1133
  %v1191 = vmul.f32 %v1120, %v1133
  %v1192 = vmul.f32 %v1121, %v1133
  %v1193 = vmul.f32 %v1122, %v1133
  %v1194 = vmul.f32 %v1123, %v1133
  %v1195 = vmul.f32 %v1124, %v1133
  %v1196 = vmul.f32 %v1125, %v1133
  %v1197 = vmul.f32 %v1126, %v1133
  %v1198 = vmul.f32 %v1127, %v1133
  %v1199 = vld [vmem:[%s3] sm:$0x1]
  %v1201 = vlaneseq
  %v1202 = vshrl.u32 %v1201, 7
  %v1203 = vsub.s32 0, %v1202
  %v1204 = vrot.slane %v1199, %v1203
  %v1206 = vadd.f32 %v1135, %v1204
  %v1207 = vadd.f32 %v1136, %v1204
  %v1208 = vadd.f32 %v1137, %v1204
  %v1209 = vadd.f32 %v1138, %v1204
  %v1210 = vadd.f32 %v1139, %v1204
  %v1211 = vadd.f32 %v1140, %v1204
  %v1212 = vadd.f32 %v1141, %v1204
  %v1213 = vadd.f32 %v1142, %v1204
  %v1214 = vadd.f32 %v1143, %v1204
  %v1215 = vadd.f32 %v1144, %v1204
  %v1216 = vadd.f32 %v1145, %v1204
  %v1217 = vadd.f32 %v1146, %v1204
  %v1218 = vadd.f32 %v1147, %v1204
  %v1219 = vadd.f32 %v1148, %v1204
  %v1220 = vadd.f32 %v1149, %v1204
  %v1221 = vadd.f32 %v1150, %v1204
  %v1222 = vadd.f32 %v1151, %v1204
  %v1223 = vadd.f32 %v1152, %v1204
  %v1224 = vadd.f32 %v1153, %v1204
  %v1225 = vadd.f32 %v1154, %v1204
  %v1226 = vadd.f32 %v1155, %v1204
  %v1227 = vadd.f32 %v1156, %v1204
  %v1228 = vadd.f32 %v1157, %v1204
  %v1229 = vadd.f32 %v1158, %v1204
  %v1230 = vadd.f32 %v1159, %v1204
  %v1231 = vadd.f32 %v1160, %v1204
  %v1232 = vadd.f32 %v1161, %v1204
  %v1233 = vadd.f32 %v1162, %v1204
  %v1234 = vadd.f32 %v1163, %v1204
  %v1235 = vadd.f32 %v1164, %v1204
  %v1236 = vadd.f32 %v1165, %v1204
  %v1237 = vadd.f32 %v1166, %v1204
  %v1238 = vadd.f32 %v1167, %v1204
  %v1239 = vadd.f32 %v1168, %v1204
  %v1240 = vadd.f32 %v1169, %v1204
  %v1241 = vadd.f32 %v1170, %v1204
  %v1242 = vadd.f32 %v1171, %v1204
  %v1243 = vadd.f32 %v1172, %v1204
  %v1244 = vadd.f32 %v1173, %v1204
  %v1245 = vadd.f32 %v1174, %v1204
  %v1246 = vadd.f32 %v1175, %v1204
  %v1247 = vadd.f32 %v1176, %v1204
  %v1248 = vadd.f32 %v1177, %v1204
  %v1249 = vadd.f32 %v1178, %v1204
  %v1250 = vadd.f32 %v1179, %v1204
  %v1251 = vadd.f32 %v1180, %v1204
  %v1252 = vadd.f32 %v1181, %v1204
  %v1253 = vadd.f32 %v1182, %v1204
  %v1254 = vadd.f32 %v1183, %v1204
  %v1255 = vadd.f32 %v1184, %v1204
  %v1256 = vadd.f32 %v1185, %v1204
  %v1257 = vadd.f32 %v1186, %v1204
  %v1258 = vadd.f32 %v1187, %v1204
  %v1259 = vadd.f32 %v1188, %v1204
  %v1260 = vadd.f32 %v1189, %v1204
  %v1261 = vadd.f32 %v1190, %v1204
  %v1262 = vadd.f32 %v1191, %v1204
  %v1263 = vadd.f32 %v1192, %v1204
  %v1264 = vadd.f32 %v1193, %v1204
  %v1265 = vadd.f32 %v1194, %v1204
  %v1266 = vadd.f32 %v1195, %v1204
  %v1267 = vadd.f32 %v1196, %v1204
  %v1268 = vadd.f32 %v1197, %v1204
  %v1269 = vadd.f32 %v1198, %v1204
  %v1270 = vmax.f32 %v1206, 0.0
  %v1271 = vmax.f32 %v1207, 0.0
  %v1272 = vmax.f32 %v1208, 0.0
  %v1273 = vmax.f32 %v1209, 0.0
  %v1274 = vmax.f32 %v1210, 0.0
  %v1275 = vmax.f32 %v1211, 0.0
  %v1276 = vmax.f32 %v1212, 0.0
  %v1277 = vmax.f32 %v1213, 0.0
  %v1278 = vmax.f32 %v1214, 0.0
  %v1279 = vmax.f32 %v1215, 0.0
  %v1280 = vmax.f32 %v1216, 0.0
  %v1281 = vmax.f32 %v1217, 0.0
  %v1282 = vmax.f32 %v1218, 0.0
  %v1283 = vmax.f32 %v1219, 0.0
  %v1284 = vmax.f32 %v1220, 0.0
  %v1285 = vmax.f32 %v1221, 0.0
  %v1286 = vmax.f32 %v1222, 0.0
  %v1287 = vmax.f32 %v1223, 0.0
  %v1288 = vmax.f32 %v1224, 0.0
  %v1289 = vmax.f32 %v1225, 0.0
  %v1290 = vmax.f32 %v1226, 0.0
  %v1291 = vmax.f32 %v1227, 0.0
  %v1292 = vmax.f32 %v1228, 0.0
  %v1293 = vmax.f32 %v1229, 0.0
  %v1294 = vmax.f32 %v1230, 0.0
  %v1295 = vmax.f32 %v1231, 0.0
  %v1296 = vmax.f32 %v1232, 0.0
  %v1297 = vmax.f32 %v1233, 0.0
  %v1298 = vmax.f32 %v1234, 0.0
  %v1299 = vmax.f32 %v1235, 0.0
  %v1300 = vmax.f32 %v1236, 0.0
  %v1301 = vmax.f32 %v1237, 0.0
  %v1302 = vmax.f32 %v1238, 0.0
  %v1303 = vmax.f32 %v1239, 0.0
  %v1304 = vmax.f32 %v1240, 0.0
  %v1305 = vmax.f32 %v1241, 0.0
  %v1306 = vmax.f32 %v1242, 0.0
  %v1307 = vmax.f32 %v1243, 0.0
  %v1308 = vmax.f32 %v1244, 0.0
  %v1309 = vmax.f32 %v1245, 0.0
  %v1310 = vmax.f32 %v1246, 0.0
  %v1311 = vmax.f32 %v1247, 0.0
  %v1312 = vmax.f32 %v1248, 0.0
  %v1313 = vmax.f32 %v1249, 0.0
  %v1314 = vmax.f32 %v1250, 0.0
  %v1315 = vmax.f32 %v1251, 0.0
  %v1316 = vmax.f32 %v1252, 0.0
  %v1317 = vmax.f32 %v1253, 0.0
  %v1318 = vmax.f32 %v1254, 0.0
  %v1319 = vmax.f32 %v1255, 0.0
  %v1320 = vmax.f32 %v1256, 0.0
  %v1321 = vmax.f32 %v1257, 0.0
  %v1322 = vmax.f32 %v1258, 0.0
  %v1323 = vmax.f32 %v1259, 0.0
  %v1324 = vmax.f32 %v1260, 0.0
  %v1325 = vmax.f32 %v1261, 0.0
  %v1326 = vmax.f32 %v1262, 0.0
  %v1327 = vmax.f32 %v1263, 0.0
  %v1328 = vmax.f32 %v1264, 0.0
  %v1329 = vmax.f32 %v1265, 0.0
  %v1330 = vmax.f32 %v1266, 0.0
  %v1331 = vmax.f32 %v1267, 0.0
  %v1332 = vmax.f32 %v1268, 0.0
  %v1333 = vmax.f32 %v1269, 0.0
  %v1334 = vpack.c.bf16 %v1271, %v1270
  %v1335 = vpack.c.bf16 %v1273, %v1272
  %v1336 = vpack.c.bf16 %v1275, %v1274
  %v1337 = vpack.c.bf16 %v1277, %v1276
  %v1338 = vpack.c.bf16 %v1279, %v1278
  %v1339 = vpack.c.bf16 %v1281, %v1280
  %v1340 = vpack.c.bf16 %v1283, %v1282
  %v1341 = vpack.c.bf16 %v1285, %v1284
  %v1342 = vpack.c.bf16 %v1287, %v1286
  %v1343 = vpack.c.bf16 %v1289, %v1288
  %v1344 = vpack.c.bf16 %v1291, %v1290
  %v1345 = vpack.c.bf16 %v1293, %v1292
  %v1346 = vpack.c.bf16 %v1295, %v1294
  %v1347 = vpack.c.bf16 %v1297, %v1296
  %v1348 = vpack.c.bf16 %v1299, %v1298
  %v1349 = vpack.c.bf16 %v1301, %v1300
  %v1350 = vpack.c.bf16 %v1303, %v1302
  %v1351 = vpack.c.bf16 %v1305, %v1304
  %v1352 = vpack.c.bf16 %v1307, %v1306
  %v1353 = vpack.c.bf16 %v1309, %v1308
  %v1354 = vpack.c.bf16 %v1311, %v1310
  %v1355 = vpack.c.bf16 %v1313, %v1312
  %v1356 = vpack.c.bf16 %v1315, %v1314
  %v1357 = vpack.c.bf16 %v1317, %v1316
  %v1358 = vpack.c.bf16 %v1319, %v1318
  %v1359 = vpack.c.bf16 %v1321, %v1320
  %v1360 = vpack.c.bf16 %v1323, %v1322
  %v1361 = vpack.c.bf16 %v1325, %v1324
  %v1362 = vpack.c.bf16 %v1327, %v1326
  %v1363 = vpack.c.bf16 %v1329, %v1328
  %v1364 = vpack.c.bf16 %v1331, %v1330
  %v1365 = vpack.c.bf16 %v1333, %v1332
  %v1398 = vunpack.c.l.b16 %v1334
  %v1399 = vunpack.c.h.b16 %v1334
  %v1400 = vunpack.c.l.b16 %v1335
  %v1401 = vunpack.c.h.b16 %v1335
  %v1402 = vunpack.c.l.b16 %v1336
  %v1403 = vunpack.c.h.b16 %v1336
  %v1404 = vunpack.c.l.b16 %v1337
  %v1405 = vunpack.c.h.b16 %v1337
  %v1406 = vunpack.c.l.b16 %v1338
  %v1407 = vunpack.c.h.b16 %v1338
  %v1408 = vunpack.c.l.b16 %v1339
  %v1409 = vunpack.c.h.b16 %v1339
  %v1410 = vunpack.c.l.b16 %v1340
  %v1411 = vunpack.c.h.b16 %v1340
  %v1412 = vunpack.c.l.b16 %v1341
  %v1413 = vunpack.c.h.b16 %v1341
  %v1414 = vunpack.c.l.b16 %v1342
  %v1415 = vunpack.c.h.b16 %v1342
  %v1416 = vunpack.c.l.b16 %v1343
  %v1417 = vunpack.c.h.b16 %v1343
  %v1418 = vunpack.c.l.b16 %v1344
  %v1419 = vunpack.c.h.b16 %v1344
  %v1420 = vunpack.c.l.b16 %v1345
  %v1421 = vunpack.c.h.b16 %v1345
  %v1422 = vunpack.c.l.b16 %v1346
  %v1423 = vunpack.c.h.b16 %v1346
  %v1424 = vunpack.c.l.b16 %v1347
  %v1425 = vunpack.c.h.b16 %v1347
  %v1426 = vunpack.c.l.b16 %v1348
  %v1427 = vunpack.c.h.b16 %v1348
  %v1428 = vunpack.c.l.b16 %v1349
  %v1429 = vunpack.c.h.b16 %v1349
  %v1430 = vunpack.c.l.b16 %v1350
  %v1431 = vunpack.c.h.b16 %v1350
  %v1432 = vunpack.c.l.b16 %v1351
  %v1433 = vunpack.c.h.b16 %v1351
  %v1434 = vunpack.c.l.b16 %v1352
  %v1435 = vunpack.c.h.b16 %v1352
  %v1436 = vunpack.c.l.b16 %v1353
  %v1437 = vunpack.c.h.b16 %v1353
  %v1438 = vunpack.c.l.b16 %v1354
  %v1439 = vunpack.c.h.b16 %v1354
  %v1440 = vunpack.c.l.b16 %v1355
  %v1441 = vunpack.c.h.b16 %v1355
  %v1442 = vunpack.c.l.b16 %v1356
  %v1443 = vunpack.c.h.b16 %v1356
  %v1444 = vunpack.c.l.b16 %v1357
  %v1445 = vunpack.c.h.b16 %v1357
  %v1446 = vunpack.c.l.b16 %v1358
  %v1447 = vunpack.c.h.b16 %v1358
  %v1448 = vunpack.c.l.b16 %v1359
  %v1449 = vunpack.c.h.b16 %v1359
  %v1450 = vunpack.c.l.b16 %v1360
  %v1451 = vunpack.c.h.b16 %v1360
  %v1452 = vunpack.c.l.b16 %v1361
  %v1453 = vunpack.c.h.b16 %v1361
  %v1454 = vunpack.c.l.b16 %v1362
  %v1455 = vunpack.c.h.b16 %v1362
  %v1456 = vunpack.c.l.b16 %v1363
  %v1457 = vunpack.c.h.b16 %v1363
  %v1458 = vunpack.c.l.b16 %v1364
  %v1459 = vunpack.c.h.b16 %v1364
  %v1460 = vunpack.c.l.b16 %v1365
  %v1461 = vunpack.c.h.b16 %v1365
  %v1462 = vpack.c.b16 %v1398, %v1398
  %v1463 = vpack.c.b16 %v1399, %v1399
  %v1464 = vpack.c.b16 %v1400, %v1400
  %v1465 = vpack.c.b16 %v1401, %v1401
  %v1466 = vpack.c.b16 %v1402, %v1402
  %v1467 = vpack.c.b16 %v1403, %v1403
  %v1468 = vpack.c.b16 %v1404, %v1404
  %v1469 = vpack.c.b16 %v1405, %v1405
  %v1470 = vpack.c.b16 %v1406, %v1406
  %v1471 = vpack.c.b16 %v1407, %v1407
  %v1472 = vpack.c.b16 %v1408, %v1408
  %v1473 = vpack.c.b16 %v1409, %v1409
  %v1474 = vpack.c.b16 %v1410, %v1410
  %v1475 = vpack.c.b16 %v1411, %v1411
  %v1476 = vpack.c.b16 %v1412, %v1412
  %v1477 = vpack.c.b16 %v1413, %v1413
  %v1478 = vpack.c.b16 %v1414, %v1414
  %v1479 = vpack.c.b16 %v1415, %v1415
  %v1480 = vpack.c.b16 %v1416, %v1416
  %v1481 = vpack.c.b16 %v1417, %v1417
  %v1482 = vpack.c.b16 %v1418, %v1418
  %v1483 = vpack.c.b16 %v1419, %v1419
  %v1484 = vpack.c.b16 %v1420, %v1420
  %v1485 = vpack.c.b16 %v1421, %v1421
  %v1486 = vpack.c.b16 %v1422, %v1422
  %v1487 = vpack.c.b16 %v1423, %v1423
  %v1488 = vpack.c.b16 %v1424, %v1424
  %v1489 = vpack.c.b16 %v1425, %v1425
  %v1490 = vpack.c.b16 %v1426, %v1426
  %v1491 = vpack.c.b16 %v1427, %v1427
  %v1492 = vpack.c.b16 %v1428, %v1428
  %v1493 = vpack.c.b16 %v1429, %v1429
  %v1494 = vpack.c.b16 %v1430, %v1430
  %v1495 = vpack.c.b16 %v1431, %v1431
  %v1496 = vpack.c.b16 %v1432, %v1432
  %v1497 = vpack.c.b16 %v1433, %v1433
  %v1498 = vpack.c.b16 %v1434, %v1434
  %v1499 = vpack.c.b16 %v1435, %v1435
  %v1500 = vpack.c.b16 %v1436, %v1436
  %v1501 = vpack.c.b16 %v1437, %v1437
  %v1502 = vpack.c.b16 %v1438, %v1438
  %v1503 = vpack.c.b16 %v1439, %v1439
  %v1504 = vpack.c.b16 %v1440, %v1440
  %v1505 = vpack.c.b16 %v1441, %v1441
  %v1506 = vpack.c.b16 %v1442, %v1442
  %v1507 = vpack.c.b16 %v1443, %v1443
  %v1508 = vpack.c.b16 %v1444, %v1444
  %v1509 = vpack.c.b16 %v1445, %v1445
  %v1510 = vpack.c.b16 %v1446, %v1446
  %v1511 = vpack.c.b16 %v1447, %v1447
  %v1512 = vpack.c.b16 %v1448, %v1448
  %v1513 = vpack.c.b16 %v1449, %v1449
  %v1514 = vpack.c.b16 %v1450, %v1450
  %v1515 = vpack.c.b16 %v1451, %v1451
  %v1516 = vpack.c.b16 %v1452, %v1452
  %v1517 = vpack.c.b16 %v1453, %v1453
  %v1518 = vpack.c.b16 %v1454, %v1454
  %v1519 = vpack.c.b16 %v1455, %v1455
  %v1520 = vpack.c.b16 %v1456, %v1456
  %v1521 = vpack.c.b16 %v1457, %v1457
  %v1522 = vpack.c.b16 %v1458, %v1458
  %v1523 = vpack.c.b16 %v1459, %v1459
  %v1524 = vpack.c.b16 %v1460, %v1460
  %v1525 = vpack.c.b16 %v1461, %v1461
  %vm1590 = vcmask 519168
  %1591 = vst.msk [vmem:[%s4] sm:$0xf] %vm1590, %v1462
  %1592 = vst.msk [vmem:[%s4 + $0x4] sm:$0xf] %vm1590, %v1463
  %1593 = vst.msk [vmem:[%s4 + $0x8] sm:$0xf] %vm1590, %v1464
  %1594 = vst.msk [vmem:[%s4 + $0xc] sm:$0xf] %vm1590, %v1465
  %1595 = vst.msk [vmem:[%s4 + $0x10] sm:$0xf] %vm1590, %v1466
  %1596 = vst.msk [vmem:[%s4 + $0x14] sm:$0xf] %vm1590, %v1467
  %1597 = vst.msk [vmem:[%s4 + $0x18] sm:$0xf] %vm1590, %v1468
  %1598 = vst.msk [vmem:[%s4 + $0x1c] sm:$0xf] %vm1590, %v1469
  %1599 = vst.msk [vmem:[%s4 + $0x20] sm:$0xf] %vm1590, %v1470
  %1600 = vst.msk [vmem:[%s4 + $0x24] sm:$0xf] %vm1590, %v1471
  %1601 = vst.msk [vmem:[%s4 + $0x28] sm:$0xf] %vm1590, %v1472
  %1602 = vst.msk [vmem:[%s4 + $0x2c] sm:$0xf] %vm1590, %v1473
  %1603 = vst.msk [vmem:[%s4 + $0x30] sm:$0xf] %vm1590, %v1474
  %1604 = vst.msk [vmem:[%s4 + $0x34] sm:$0xf] %vm1590, %v1475
  %1605 = vst.msk [vmem:[%s4 + $0x38] sm:$0xf] %vm1590, %v1476
  %1606 = vst.msk [vmem:[%s4 + $0x3c] sm:$0xf] %vm1590, %v1477
  %1607 = vst.msk [vmem:[%s4 + $0x40] sm:$0xf] %vm1590, %v1478
  %1608 = vst.msk [vmem:[%s4 + $0x44] sm:$0xf] %vm1590, %v1479
  %1609 = vst.msk [vmem:[%s4 + $0x48] sm:$0xf] %vm1590, %v1480
  %1610 = vst.msk [vmem:[%s4 + $0x4c] sm:$0xf] %vm1590, %v1481
  %1611 = vst.msk [vmem:[%s4 + $0x50] sm:$0xf] %vm1590, %v1482
  %1612 = vst.msk [vmem:[%s4 + $0x54] sm:$0xf] %vm1590, %v1483
  %1613 = vst.msk [vmem:[%s4 + $0x58] sm:$0xf] %vm1590, %v1484
  %1614 = vst.msk [vmem:[%s4 + $0x5c] sm:$0xf] %vm1590, %v1485
  %1615 = vst.msk [vmem:[%s4 + $0x60] sm:$0xf] %vm1590, %v1486
  %1616 = vst.msk [vmem:[%s4 + $0x64] sm:$0xf] %vm1590, %v1487
  %1617 = vst.msk [vmem:[%s4 + $0x68] sm:$0xf] %vm1590, %v1488
  %1618 = vst.msk [vmem:[%s4 + $0x6c] sm:$0xf] %vm1590, %v1489
  %1619 = vst.msk [vmem:[%s4 + $0x70] sm:$0xf] %vm1590, %v1490
  %1620 = vst.msk [vmem:[%s4 + $0x74] sm:$0xf] %vm1590, %v1491
  %1621 = vst.msk [vmem:[%s4 + $0x78] sm:$0xf] %vm1590, %v1492
  %1622 = vst.msk [vmem:[%s4 + $0x7c] sm:$0xf] %vm1590, %v1493
  %1623 = vst.msk [vmem:[%s4 + $0x80] sm:$0xf] %vm1590, %v1494
  %1624 = vst.msk [vmem:[%s4 + $0x84] sm:$0xf] %vm1590, %v1495
  %1625 = vst.msk [vmem:[%s4 + $0x88] sm:$0xf] %vm1590, %v1496
  %1626 = vst.msk [vmem:[%s4 + $0x8c] sm:$0xf] %vm1590, %v1497
  %1627 = vst.msk [vmem:[%s4 + $0x90] sm:$0xf] %vm1590, %v1498
  %1628 = vst.msk [vmem:[%s4 + $0x94] sm:$0xf] %vm1590, %v1499
  %1629 = vst.msk [vmem:[%s4 + $0x98] sm:$0xf] %vm1590, %v1500
  %1630 = vst.msk [vmem:[%s4 + $0x9c] sm:$0xf] %vm1590, %v1501
  %1631 = vst.msk [vmem:[%s4 + $0xa0] sm:$0xf] %vm1590, %v1502
  %1632 = vst.msk [vmem:[%s4 + $0xa4] sm:$0xf] %vm1590, %v1503
  %1633 = vst.msk [vmem:[%s4 + $0xa8] sm:$0xf] %vm1590, %v1504
  %1634 = vst.msk [vmem:[%s4 + $0xac] sm:$0xf] %vm1590, %v1505
  %1635 = vst.msk [vmem:[%s4 + $0xb0] sm:$0xf] %vm1590, %v1506
  %1636 = vst.msk [vmem:[%s4 + $0xb4] sm:$0xf] %vm1590, %v1507
  %1637 = vst.msk [vmem:[%s4 + $0xb8] sm:$0xf] %vm1590, %v1508
  %1638 = vst.msk [vmem:[%s4 + $0xbc] sm:$0xf] %vm1590, %v1509
  %1639 = vst.msk [vmem:[%s4 + $0xc0] sm:$0xf] %vm1590, %v1510
  %1640 = vst.msk [vmem:[%s4 + $0xc4] sm:$0xf] %vm1590, %v1511
  %1641 = vst.msk [vmem:[%s4 + $0xc8] sm:$0xf] %vm1590, %v1512
  %1642 = vst.msk [vmem:[%s4 + $0xcc] sm:$0xf] %vm1590, %v1513
  %1643 = vst.msk [vmem:[%s4 + $0xd0] sm:$0xf] %vm1590, %v1514
  %1644 = vst.msk [vmem:[%s4 + $0xd4] sm:$0xf] %vm1590, %v1515
  %1645 = vst.msk [vmem:[%s4 + $0xd8] sm:$0xf] %vm1590, %v1516
  %1646 = vst.msk [vmem:[%s4 + $0xdc] sm:$0xf] %vm1590, %v1517
  %1647 = vst.msk [vmem:[%s4 + $0xe0] sm:$0xf] %vm1590, %v1518
  %1648 = vst.msk [vmem:[%s4 + $0xe4] sm:$0xf] %vm1590, %v1519
  %1649 = vst.msk [vmem:[%s4 + $0xe8] sm:$0xf] %vm1590, %v1520
  %1650 = vst.msk [vmem:[%s4 + $0xec] sm:$0xf] %vm1590, %v1521
  %1651 = vst.msk [vmem:[%s4 + $0xf0] sm:$0xf] %vm1590, %v1522
  %1652 = vst.msk [vmem:[%s4 + $0xf4] sm:$0xf] %vm1590, %v1523
  %1653 = vst.msk [vmem:[%s4 + $0xf8] sm:$0xf] %vm1590, %v1524
  %1654 = vst.msk [vmem:[%s4 + $0xfc] sm:$0xf] %vm1590, %v1525
  // Predicated region
  $region18: #{tpu_custom_call.1} parent=0 // pred_check
    _
  $region19: #{tpu_custom_call.1} parent=0 // pred_check_branch
    %1656 = sbr.rel (0) target = $region21
  $region20: #{tpu_custom_call.1} parent=0 // pred_region
    _
  $region21: #{tpu_custom_call.1} parent=0 // pred_fallthru
    _
  // Predicated region
  $region22: #{tpu_custom_call.1} parent=0 // pred_check
    _
  $region23: #{tpu_custom_call.1} parent=0 // pred_check_branch
    %1658 = sbr.rel (0) target = $region25
  $region24: #{tpu_custom_call.1} parent=0 // pred_region
    _
  $region25: #{tpu_custom_call.1} parent=0 // pred_fallthru
    _

</llo_original>
